<compile_context>
chip_gen: v7x
topology: tpu7x:2x2x1
jax: 0.10.0
libtpu: 0.0.40
codegen_flags: <defaults>
</compile_context>

<pallas_src>
import functools

import jax
import jax.numpy as jnp
from jax.experimental import pallas as pl
from jax.experimental.pallas import tpu as pltpu

IN_CH = 8           # last 8 BERT hidden-state layers -> conv in_channels
OUT_CH = 32         # conv out_channels
GROUPS = 4
NUM_CLASSES = 12
KSIZES = (3, 4, 5)  # conv1/conv2/conv3 kernel heights (padding = k - 1)
MAX_PAD = 4         # largest padding (k=5 -> pad 4); single padded slab reused by all
TAPS = MAX_PAD + 1  # 5 shared taps cover all three kernel sizes
NFUSE = 128         # fused conv output width: 3*OUT_CH = 96, padded to full lane width
NWIDE = TAPS * NFUSE  # 640: taps fused into the matmul N dimension
NCPAD = 128         # NUM_CLASSES padded to full lane width for a lane-dense store
VMEM_BUDGET = 48 * 1024 * 1024  # explicit budget; fits v7x's 64 MiB physical VMEM


# ----------------------------- Pallas kernel ---------------------------------
def _head_kernel(x_ref, wf_ref, bf_ref, wl_ref, bl_ref, out_ref, *, seq_len):
    bb, lp, ce = x_ref.shape
    l_common = seq_len + MAX_PAD            # output rows of the widest (k=5) conv

    # ONE MXU matmul per grid step: M = bb*lp, K = ce, N = 640 (taps fused into N).
    x2d = x_ref[...].reshape(bb * lp, ce)   # layout-free merge (lp is 8-aligned)
    y = jnp.dot(x2d, wf_ref[...], preferred_element_type=jnp.float32)
    y = y.reshape(bb, lp, NWIDE)            # small f32 intermediate

    # Tap shift applied on the small f32 result (NOT on the big bf16 x slab):
    #   acc[b, r, :] = sum_t y[b, r + t, t*128:(t+1)*128]
    acc = y[:, 0:l_common, 0:NFUSE]
    for t in range(1, TAPS):
        acc = acc + y[:, t:t + l_common, t * NFUSE:(t + 1) * NFUSE]

    act = jnp.maximum(acc + bf_ref[...], 0.0)        # conv bias + ReLU

    # Rows past each conv's true output length are spurious (pure padding -> bias).
    # NOTE: zeroing them is exact ONLY because it happens AFTER ReLU (every valid
    # entry is >= 0) and BEFORE the max-pool; keep these three steps in this order.
    # Columns: [0,32)=k3, [32,64)=k4, [64,96)=k5, [96,128)=class-lane padding.
    row = jax.lax.broadcasted_iota(jnp.int32, (l_common, NFUSE), 0)
    col = jax.lax.broadcasted_iota(jnp.int32, (l_common, NFUSE), 1)
    valid_len = jnp.where(col < OUT_CH, seq_len + 2,
                          jnp.where(col < 2 * OUT_CH, seq_len + 3,
                                    jnp.where(col < 3 * OUT_CH, seq_len + 4, 0)))
    act = jnp.where(row < valid_len, act, 0.0)

    feat = jnp.max(act, axis=1)                      # global max-pool -> (bb, 128)

    # TODO(synk): nn.Dropout is identity at inference time (no train-mode RNG here).
    logit = jnp.dot(feat, wl_ref[...],
                    preferred_element_type=jnp.float32) + bl_ref[...]
    out_ref[...] = (1.0 / (1.0 + jnp.exp(-logit))).reshape(bb, 1, NCPAD)   # sigmoid


# ----------------------------- weight packing ---------------------------------
def _expand_grouped(w):
    """PyTorch grouped Conv2d weight (O, I/G, kH, kW) -> dense (O, I, kH, kW)."""
    # TODO(synk): dense expansion is 75% structural zeros; fine while overhead-bound,
    # switch to a block-diagonal contraction if the kernel ever becomes MXU-bound.
    o, ipg, kh, kw = w.shape
    opg = o // GROUPS
    wd = jnp.zeros((o, IN_CH, kh, kw), w.dtype)
    for g in range(GROUPS):
        wd = wd.at[g * opg:(g + 1) * opg, g * ipg:(g + 1) * ipg].set(
            w[g * opg:(g + 1) * opg])
    return wd


def _pack_fused_weights(conv_params, ce):
    """All three convs -> one (CE, TAPS*NFUSE) bf16 weight slab + (1, NFUSE) f32 bias.

    Taps are fused into the N dimension: column block t holds the tap-t weights of
    every conv.  For kernel size k (padding k-1), tap index of weight row dh is
    t = dh + (MAX_PAD - (k - 1)), so all convs share the SAME unshifted x matmul and
    the shift is applied on the small f32 result inside the kernel.
    """
    wf = jnp.zeros((ce, NWIDE), jnp.float32)
    bf = jnp.zeros((1, NFUSE), jnp.float32)
    for idx, (k, (w, b)) in enumerate(zip(KSIZES, conv_params)):
        wd = _expand_grouped(w)                                       # (32, 8, k, E)
        wm = jnp.transpose(wd, (2, 1, 3, 0)).reshape(k, ce, OUT_CH)   # (k, CE, 32)
        c0 = idx * OUT_CH
        for dh in range(k):
            t = dh + (MAX_PAD - (k - 1))
            wf = wf.at[:, t * NFUSE + c0: t * NFUSE + c0 + OUT_CH].set(wm[dh])
        bf = bf.at[0, c0:c0 + OUT_CH].set(b)
    return wf.astype(jnp.bfloat16), bf


def _pick_bb(batch, lp, ce, *, max_bb=8, vmem_budget=VMEM_BUDGET):
    """Batch block size: fit the VMEM budget (double-buffered x + f32 intermediate),
    divide B, and prefer an EVEN number of grid steps (v7x dual-TC balance)."""
    per_row = 2 * lp * ce * 2 + lp * NWIDE * 4                 # 2x-buffered bf16 x + f32 y
    const = ce * NWIDE * 2 + NFUSE * NCPAD * 4 + (NFUSE + NCPAD) * 4  # 1x-buffered weights
    cap = max(1, min(max_bb, (max(vmem_budget - const, per_row)) // per_row))
    divs = [d for d in range(1, min(cap, batch) + 1) if batch % d == 0]
    even = [d for d in divs if (batch // d) % 2 == 0]
    if even:
        return max(even)
    multi = [d for d in divs if batch // d >= 2]
    return max(multi) if multi else max(divs)


# ----------------------------- pallas_call wrapper -----------------------------
def cnn_head_pallas(hidden_state, conv_params, wl, bl, *, max_bb=8):
    """hidden_state: (B, IN_CH, L, E) float32  (torch NCHW conv input)."""
    B, C, L, E = hidden_state.shape
    CE = C * E
    Lp = L + 2 * MAX_PAD
    lp_extra = (-Lp) % 8                  # keep the sublane dim 8-aligned so the
    Lp += lp_extra                        # in-kernel (bb,Lp,CE)->(bb*Lp,CE) merge is free

    # Cast BEFORE the pad/transpose so this extra HBM pass moves bf16, not f32.
    # TODO(synk): at real (B, L, E) scale this layout pass could be folded into the
    # kernel by accepting (B, C, Lp, E) blocks and a (C, E, NWIDE) weight contraction.
    x = hidden_state.astype(jnp.bfloat16)
    x = jnp.pad(x, ((0, 0), (0, 0), (MAX_PAD, MAX_PAD + lp_extra), (0, 0)))
    x = jnp.transpose(x, (0, 2, 1, 3)).reshape(B, Lp, CE)

    wf, bf = _pack_fused_weights(conv_params, CE)
    wl_pad = jnp.zeros((NFUSE, NCPAD), jnp.float32)
    wl_pad = wl_pad.at[:3 * OUT_CH, :NUM_CLASSES].set(wl)
    bl_pad = jnp.zeros((1, NCPAD), jnp.float32)
    bl_pad = bl_pad.at[:, :NUM_CLASSES].set(bl.reshape(1, NUM_CLASSES))

    bb = _pick_bb(B, Lp, CE, max_bb=max_bb)
    kernel = functools.partial(_head_kernel, seq_len=L)

    cost = pl.CostEstimate(
        flops=2 * B * Lp * CE * NWIDE + 2 * B * NFUSE * NCPAD,
        transcendentals=B * NCPAD,
        bytes_accessed=(x.size * 2 + wf.size * 2 + bf.size * 4
                        + wl_pad.size * 4 + bl_pad.size * 4 + B * NCPAD * 4))

    def const_spec(shape):
        # Block never changes across grid steps -> single-buffer it (saves VMEM).
        return pl.BlockSpec(shape, lambda i: (0,) * len(shape),
                            pipeline_mode=pl.Buffered(buffer_count=1))

    out = pl.pallas_call(
        kernel,
        out_shape=jax.ShapeDtypeStruct((B, 1, NCPAD), jnp.float32),
        grid_spec=pltpu.PrefetchScalarGridSpec(
            num_scalar_prefetch=0,
            grid=(B // bb,),
            in_specs=[
                pl.BlockSpec((bb, Lp, CE), lambda i: (i, 0, 0)),  # activations
                const_spec((CE, NWIDE)),                          # fused conv W (taps in N)
                const_spec((1, NFUSE)),                           # fused conv bias
                const_spec((NFUSE, NCPAD)),                       # final linear W
                const_spec((1, NCPAD)),                           # final linear bias
            ],
            out_specs=pl.BlockSpec((bb, 1, NCPAD), lambda i: (i, 0, 0)),
        ),
        compiler_params=pltpu.CompilerParams(
            dimension_semantics=("parallel",),
            vmem_limit_bytes=VMEM_BUDGET),
        cost_estimate=cost,
    )(x, wf, bf, wl_pad, bl_pad)
    return out[:, 0, :NUM_CLASSES]


# ----------------------------- plain-JAX glue ---------------------------------
def synthetic_bert_hidden_states(bert_params, input_ids, token_type_ids, attention_mask):
    # TODO(synk): pretrained 'indolem/indobert-base-uncased' encoder is not loadable
    # here; replaced by a deterministic synthetic embedding + 12 tanh-dense layers
    # producing 13 hidden states with the same (B, L, E) layout / stacking semantics.
    emb = (bert_params["word_emb"][input_ids]
           + bert_params["type_emb"][token_type_ids]
           + bert_params["pos_emb"][None, : input_ids.shape[1]])
    emb = emb * attention_mask[..., None].astype(emb.dtype)
    hs = [emb]
    h = emb
    for wi, bi in bert_params["layers"]:
        h = jnp.tanh(h @ wi + bi)
        hs.append(h)
    return jnp.stack(hs, axis=1)                          # (B, 13, L, E)


def cnn_bert_forward(params, input_ids, token_type_ids, attention_mask):
    hidden = synthetic_bert_hidden_states(params["bert"], input_ids,
                                          token_type_ids, attention_mask)
    hidden = hidden[:, -IN_CH:]                           # torch.stack(...)[:, -8:]
    return cnn_head_pallas(hidden, params["convs"], params["wl"], params["bl"])


def ref_head(hidden, conv_params, wl, bl):
    """Pure-JAX f32 reference of the conv/pool/linear/sigmoid head (for validation)."""
    feats = []
    for k, (w, b) in zip(KSIZES, conv_params):
        y = jax.lax.conv_general_dilated(
            hidden, w, window_strides=(1, 1),
            padding=((k - 1, k - 1), (0, 0)),
            dimension_numbers=("NCHW", "OIHW", "NCHW"),
            feature_group_count=GROUPS)                   # (B, 32, L_out, 1)
        y = jnp.maximum(y + b[None, :, None, None], 0.0)[..., 0]
        feats.append(jnp.max(y, axis=2))                  # (B, 32)
    x = jnp.concatenate(feats, axis=1)                    # (B, 96)
    return jax.nn.sigmoid(x @ wl + bl)


def init_params(key, vocab, seq_len, emb_dim):
    keys = iter(jax.random.split(key, 32))
    s = 0.02
    bert = {
        "word_emb": s * jax.random.normal(next(keys), (vocab, emb_dim), jnp.float32),
        "type_emb": s * jax.random.normal(next(keys), (2, emb_dim), jnp.float32),
        "pos_emb": s * jax.random.normal(next(keys), (seq_len, emb_dim), jnp.float32),
        "layers": [
            ((1.0 / jnp.sqrt(emb_dim)) *
             jax.random.normal(next(keys), (emb_dim, emb_dim), jnp.float32),
             jnp.zeros((emb_dim,), jnp.float32))
            for _ in range(12)
        ],
    }
    convs = []
    for k in KSIZES:
        fan_in = (IN_CH // GROUPS) * k * emb_dim
        w = (1.0 / jnp.sqrt(fan_in)) * jax.random.normal(
            next(keys), (OUT_CH, IN_CH // GROUPS, k, emb_dim), jnp.float32)
        b = 0.1 * jax.random.normal(next(keys), (OUT_CH,), jnp.float32)
        convs.append((w, b))
    wl = (1.0 / jnp.sqrt(3.0 * OUT_CH)) * jax.random.normal(
        next(keys), (3 * OUT_CH, NUM_CLASSES), jnp.float32)
    bl = 0.1 * jax.random.normal(next(keys), (1, NUM_CLASSES), jnp.float32)
    return {"bert": bert, "convs": convs, "wl": wl, "bl": bl}


if __name__ == "__main__":
    L, E, VOCAB = 8, 128, 100
    key = jax.random.PRNGKey(0)
    pkey, dkey = jax.random.split(key)
    params = init_params(pkey, VOCAB, L, E)

    # Exercise both the bb=1 (grid=2) and bb>1 batch-blocked paths.
    for B in (2, 8):
        ids = jax.random.randint(jax.random.fold_in(dkey, B), (B, L), 0, VOCAB,
                                 dtype=jnp.int32)
        token_type_ids = jnp.zeros((B, L), jnp.int32)
        attention_mask = jnp.ones((B, L), jnp.int32)

        out = cnn_bert_forward(params, ids, token_type_ids, attention_mask)
        out = jax.block_until_ready(out)
        assert out.shape == (B, NUM_CLASSES), out.shape

        hidden = synthetic_bert_hidden_states(
            params["bert"], ids, token_type_ids, attention_mask)[:, -IN_CH:]
        ref = ref_head(hidden, params["convs"], params["wl"], params["bl"])
        # bf16 activations/weights in the kernel vs f32 reference -> ~1e-2 tolerance.
        err = jnp.max(jnp.abs(out - ref))
        assert jnp.allclose(out, ref, atol=2e-2, rtol=2e-2), float(err)

    print("KERNEL_OK")
</pallas_src>

<mosaic_0001>
module attributes {stable_mosaic.version = 11 : i64} {
  func.func @_head_kernel(%arg0: i32, %arg1: memref<1x16x1024xbf16, #tpu.memory_space<vmem>>, %arg2: memref<1024x640xbf16, #tpu.memory_space<vmem>>, %arg3: memref<1x128xf32, #tpu.memory_space<vmem>>, %arg4: memref<128x128xf32, #tpu.memory_space<vmem>>, %arg5: memref<1x128xf32, #tpu.memory_space<vmem>>, %arg6: memref<1x1x128xf32, #tpu.memory_space<vmem>>) attributes {dimension_semantics = [#tpu.dimension_semantics<parallel>], iteration_bounds = array<i64: 2>, scalar_prefetch = 0 : i64, scratch_operands = 0 : i64, tpu.core_type = #tpu.core_type<tc>, window_params = [{transform_indices = @transform_0, window_bounds = array<i64: 1, 16, 1024>}, {pipeline_mode = #tpu.pipeline_mode<synchronous>, transform_indices = @transform_1, window_bounds = array<i64: 1024, 640>}, {pipeline_mode = #tpu.pipeline_mode<synchronous>, transform_indices = @transform_2, window_bounds = array<i64: 1, 128>}, {pipeline_mode = #tpu.pipeline_mode<synchronous>, transform_indices = @transform_3, window_bounds = array<i64: 128, 128>}, {pipeline_mode = #tpu.pipeline_mode<synchronous>, transform_indices = @transform_4, window_bounds = array<i64: 1, 128>}, {transform_indices = @transform_5, window_bounds = array<i64: 1, 1, 128>}]} {
    %c0 = arith.constant 0 : index
    %c0_0 = arith.constant 0 : index
    %c0_1 = arith.constant 0 : index
    %0 = vector.load %arg1[%c0, %c0_0, %c0_1] : memref<1x16x1024xbf16, #tpu.memory_space<vmem>>, vector<1x16x1024xbf16>
    %1 = vector.shape_cast %0 : vector<1x16x1024xbf16> to vector<16x1024xbf16>
    %c0_2 = arith.constant 0 : index
    %c0_3 = arith.constant 0 : index
    %2 = vector.load %arg2[%c0_2, %c0_3] : memref<1024x640xbf16, #tpu.memory_space<vmem>>, vector<1024x640xbf16>
    %cst = arith.constant dense<0.000000e+00> : vector<16x640xf32>
    %3 = tpu.matmul %1, %2, %cst {dimension_numbers = #tpu.dot_dimension_numbers<[1], [0], [0], [1], [0, 0, 1, 1], [], []>} : vector<16x1024xbf16>, vector<1024x640xbf16>, vector<16x640xf32> -> vector<16x640xf32>
    %4 = vector.shape_cast %3 : vector<16x640xf32> to vector<1x16x640xf32>
    %5 = vector.extract_strided_slice %4 {offsets = [0, 0, 0], sizes = [1, 12, 128], strides = [1, 1, 1]} : vector<1x16x640xf32> to vector<1x12x128xf32>
    %6 = vector.extract_strided_slice %4 {offsets = [0, 1, 128], sizes = [1, 12, 128], strides = [1, 1, 1]} : vector<1x16x640xf32> to vector<1x12x128xf32>
    %7 = arith.addf %5, %6 : vector<1x12x128xf32>
    %8 = vector.extract_strided_slice %4 {offsets = [0, 2, 256], sizes = [1, 12, 128], strides = [1, 1, 1]} : vector<1x16x640xf32> to vector<1x12x128xf32>
    %9 = arith.addf %7, %8 : vector<1x12x128xf32>
    %10 = vector.extract_strided_slice %4 {offsets = [0, 3, 384], sizes = [1, 12, 128], strides = [1, 1, 1]} : vector<1x16x640xf32> to vector<1x12x128xf32>
    %11 = arith.addf %9, %10 : vector<1x12x128xf32>
    %12 = vector.extract_strided_slice %4 {offsets = [0, 4, 512], sizes = [1, 12, 128], strides = [1, 1, 1]} : vector<1x16x640xf32> to vector<1x12x128xf32>
    %13 = arith.addf %11, %12 : vector<1x12x128xf32>
    %c0_4 = arith.constant 0 : index
    %c0_5 = arith.constant 0 : index
    %14 = vector.load %arg3[%c0_4, %c0_5] : memref<1x128xf32, #tpu.memory_space<vmem>>, vector<1x128xf32>
    %15 = vector.shape_cast %14 : vector<1x128xf32> to vector<1x1x128xf32>
    %16 = vector.broadcast %15 : vector<1x1x128xf32> to vector<1x12x128xf32>
    %17 = arith.addf %13, %16 : vector<1x12x128xf32>
    %cst_6 = arith.constant 0.000000e+00 : f32
    %18 = vector.broadcast %cst_6 : f32 to vector<1x12x128xf32>
    %19 = arith.maximumf %17, %18 : vector<1x12x128xf32>
    %20 = tpu.iota {dimensions = array<i32: 0>} : vector<12x128xi32>
    %21 = tpu.iota {dimensions = array<i32: 1>} : vector<12x128xi32>
    %c32_i32 = arith.constant 32 : i32
    %22 = vector.broadcast %c32_i32 : i32 to vector<12x128xi32>
    %23 = arith.cmpi slt, %21, %22 : vector<12x128xi32>
    %c64_i32 = arith.constant 64 : i32
    %24 = vector.broadcast %c64_i32 : i32 to vector<12x128xi32>
    %25 = arith.cmpi slt, %21, %24 : vector<12x128xi32>
    %c96_i32 = arith.constant 96 : i32
    %26 = vector.broadcast %c96_i32 : i32 to vector<12x128xi32>
    %27 = arith.cmpi slt, %21, %26 : vector<12x128xi32>
    %c12_i32 = arith.constant 12 : i32
    %c0_i32 = arith.constant 0 : i32
    %28 = vector.broadcast %c12_i32 : i32 to vector<12x128xi32>
    %29 = vector.broadcast %c0_i32 : i32 to vector<12x128xi32>
    %30 = arith.select %27, %28, %29 : vector<12x128xi1>, vector<12x128xi32>
    %c11_i32 = arith.constant 11 : i32
    %31 = vector.broadcast %c11_i32 : i32 to vector<12x128xi32>
    %32 = arith.select %25, %31, %30 : vector<12x128xi1>, vector<12x128xi32>
    %c10_i32 = arith.constant 10 : i32
    %33 = vector.broadcast %c10_i32 : i32 to vector<12x128xi32>
    %34 = arith.select %23, %33, %32 : vector<12x128xi1>, vector<12x128xi32>
    %35 = arith.cmpi slt, %20, %34 : vector<12x128xi32>
    %cst_7 = arith.constant 0.000000e+00 : f32
    %36 = vector.shape_cast %35 : vector<12x128xi1> to vector<1x12x128xi1>
    %37 = vector.broadcast %cst_7 : f32 to vector<1x12x128xf32>
    %38 = arith.select %36, %19, %37 : vector<1x12x128xi1>, vector<1x12x128xf32>
    %cst_8 = arith.constant dense<0xFF800000> : vector<1x128xf32>
    %39 = vector.multi_reduction <maximumf>, %38, %cst_8 [1] : vector<1x12x128xf32> to vector<1x128xf32>
    %c0_9 = arith.constant 0 : index
    %c0_10 = arith.constant 0 : index
    %40 = vector.load %arg4[%c0_9, %c0_10] : memref<128x128xf32, #tpu.memory_space<vmem>>, vector<128x128xf32>
    %cst_11 = arith.constant dense<0.000000e+00> : vector<1x128xf32>
    %41 = tpu.matmul %39, %40, %cst_11 {dimension_numbers = #tpu.dot_dimension_numbers<[1], [0], [0], [1], [0, 0, 1, 1], [], []>} : vector<1x128xf32>, vector<128x128xf32>, vector<1x128xf32> -> vector<1x128xf32>
    %c0_12 = arith.constant 0 : index
    %c0_13 = arith.constant 0 : index
    %42 = vector.load %arg5[%c0_12, %c0_13] : memref<1x128xf32, #tpu.memory_space<vmem>>, vector<1x128xf32>
    %43 = arith.addf %41, %42 : vector<1x128xf32>
    %cst_14 = arith.constant 0.000000e+00 : f32
    %44 = vector.broadcast %cst_14 : f32 to vector<1x128xf32>
    %45 = arith.subf %44, %43 : vector<1x128xf32>
    %46 = math.exp %45 : vector<1x128xf32>
    %cst_15 = arith.constant 1.000000e+00 : f32
    %47 = vector.broadcast %cst_15 : f32 to vector<1x128xf32>
    %48 = arith.addf %47, %46 : vector<1x128xf32>
    %cst_16 = arith.constant 1.000000e+00 : f32
    %49 = vector.broadcast %cst_16 : f32 to vector<1x128xf32>
    %50 = arith.divf %49, %48 : vector<1x128xf32>
    %51 = vector.shape_cast %50 : vector<1x128xf32> to vector<1x1x128xf32>
    %c0_17 = arith.constant 0 : index
    %c0_18 = arith.constant 0 : index
    %c0_19 = arith.constant 0 : index
    %52 = vector.load %arg6[%c0_17, %c0_18, %c0_19] : memref<1x1x128xf32, #tpu.memory_space<vmem>>, vector<1x1x128xf32>
    tpu.vector_store %arg6[%c0_17, %c0_18, %c0_19], %51 {strides = array<i32>} : memref<1x1x128xf32, #tpu.memory_space<vmem>>, vector<1x1x128xf32>,
    return
  }
  func.func @transform_0(%arg0: i32) -> (i32, i32, i32) {
    %c0_i32 = arith.constant 0 : i32
    %c0_i32_0 = arith.constant 0 : i32
    %c0_i32_1 = arith.constant 0 : i32
    return %arg0, %c0_i32, %c0_i32_0 : i32, i32, i32
  }
  func.func @transform_1(%arg0: i32) -> (i32, i32) {
    %c0_i32 = arith.constant 0 : i32
    %c0_i32_0 = arith.constant 0 : i32
    %c0_i32_1 = arith.constant 0 : i32
    return %c0_i32, %c0_i32_0 : i32, i32
  }
  func.func @transform_2(%arg0: i32) -> (i32, i32) {
    %c0_i32 = arith.constant 0 : i32
    %c0_i32_0 = arith.constant 0 : i32
    %c0_i32_1 = arith.constant 0 : i32
    return %c0_i32, %c0_i32_0 : i32, i32
  }
  func.func @transform_3(%arg0: i32) -> (i32, i32) {
    %c0_i32 = arith.constant 0 : i32
    %c0_i32_0 = arith.constant 0 : i32
    %c0_i32_1 = arith.constant 0 : i32
    return %c0_i32, %c0_i32_0 : i32, i32
  }
  func.func @transform_4(%arg0: i32) -> (i32, i32) {
    %c0_i32 = arith.constant 0 : i32
    %c0_i32_0 = arith.constant 0 : i32
    %c0_i32_1 = arith.constant 0 : i32
    return %c0_i32, %c0_i32_0 : i32, i32
  }
  func.func @transform_5(%arg0: i32) -> (i32, i32, i32) {
    %c0_i32 = arith.constant 0 : i32
    %c0_i32_0 = arith.constant 0 : i32
    %c0_i32_1 = arith.constant 0 : i32
    return %arg0, %c0_i32, %c0_i32_0 : i32, i32, i32
  }
}

</mosaic_0001>

<llo_original>
// kernel: tpu_custom_call.1
$region0: #{tpu_custom_call.1}
  #allocation0 [shape = 'u32[]', space=smem, size = 0x4, offset = 0x4, fixed_abs, tag = 'smem constant byte address 0x4 - core index']
  #allocation1 [shape = 'u32[144,128]{1,0:T(1,128)}', space=vmem, size = 0x12000, scoped, tag = 'internal scratch']
  %s0 = inlined_call_operand.hbm [shape: bf16[2,16,1024], index: 0, kind: input, shape index: {}]
  %s1 = inlined_call_operand.hbm [shape: bf16[1024,640], index: 1, kind: input, shape index: {}]
  %s2 = inlined_call_operand.hbm [shape: f32[1,128], index: 2, kind: input, shape index: {}]
  %s3 = inlined_call_operand.hbm [shape: f32[128,128], index: 3, kind: input, shape index: {}]
  %s4 = inlined_call_operand.hbm [shape: f32[1,128], index: 4, kind: input, shape index: {}]
  %s5 = inlined_call_operand.hbm [shape: f32[2,1,128], index: 5, kind: output, shape index: {}]
  %s6 = sld [smem:[#allocation0]]
  $region73: #{tpu_custom_call.1} parent=0
    _
  %s8 = ssub.s32 1, %s6
  %s9 = scalar_select 0, %s8, %s6
  $region1: #{tpu_custom_call.1} parent=0
    #allocation2 [shape = 'u8[65536]{0}', space=vmem, size = 0x10000, scoped, tag = 'input window, operand 0']
    #allocation3 [shape = 's32[2]{0}', space=sflag, size = 0x8, scoped, tag = 'scoped memory for tpu_custom_call.1']
    #allocation4 [shape = 's32[2]{0}', space=sflag, size = 0x8, scoped, tag = 'scoped memory for tpu_custom_call.1']
    #allocation5 [shape = 'u8[1310720]{0}', space=vmem, size = 0x140000, scoped, tag = 'input window, operand 1, single buffered']
    #allocation6 [shape = 's32[1]{0}', space=sflag, size = 0x4, scoped, tag = 'scoped memory for tpu_custom_call.1']
    #allocation7 [shape = 'u8[512]{0}', space=vmem, size = 0x400, scoped, tag = 'input window, operand 2, single buffered']
    #allocation8 [shape = 'u8[65536]{0}', space=vmem, size = 0x10000, scoped, tag = 'input window, operand 3, single buffered']
    #allocation9 [shape = 's32[1]{0}', space=sflag, size = 0x4, scoped, tag = 'scoped memory for tpu_custom_call.1']
    #allocation10 [shape = 'u8[512]{0}', space=vmem, size = 0x400, scoped, tag = 'input window, operand 4, single buffered']
    #allocation11 [shape = 'u8[1024]{0}', space=vmem, size = 0x400, scoped, tag = 'output window, operand 0']
    %10 = vsyncpa [#allocation3], 0
    %s11 = scalar_lea.sflag [#allocation3], 1
    %12 = vsyncpa %s11, 0
    %13 = vsyncpa [#allocation6], 0
    %14 = vsyncpa [#allocation9], 0
    %15 = vsyncpa [#allocation4], 0
    %s16 = scalar_lea.sflag [#allocation4], 1
    %17 = vsyncpa %s16, 0
    loop: start=0, step=1, limit=4
    $region2: #{tpu_custom_call.1} parent=1 // loop_pre_header
      _
    $region3: #{tpu_custom_call.1} parent=1 // loop_header
      %s19 = sphi 0, %s23
      %p20 = scmp.ge.s32.totalorder %s19, 4
      %s29 = sphi 0, %s31
      %s32 = sphi 0, %s29
      %s33 = sphi 0, %s32
      %s49 = sphi 0, %s33
      %s53 = sphi 0, %s53
      %s55 = sphi 0, %s53
      %s56 = sphi 0, %s55
      %s70 = sphi 0, %s56
      %s74 = sphi 0, %s74
      %s76 = sphi 0, %s74
      %s77 = sphi 0, %s76
      %s91 = sphi 0, %s77
      %s95 = sphi 0, %s95
      %s97 = sphi 0, %s95
      %s98 = sphi 0, %s97
      %s112 = sphi 0, %s98
      %s116 = sphi 0, %s116
      %s118 = sphi 0, %s116
      %s119 = sphi 0, %s118
      %s133 = sphi 0, %s119
      %s139 = sphi 0, %s141
      %s142 = sphi 0, %s139
      %s143 = sphi 0, %s142
      %s159 = sphi 0, %s143
    $region4: #{tpu_custom_call.1} parent=1 // loop_header_branch
      %22 = sbr.rel (%p20) target = $region8
    $region5: #{tpu_custom_call.1} parent=1 // loop_body
      %s24 = ssub.s32 %s19, 1
      %s25 = ssub.s32 %s19, 2
      %s26 = sadd.s32 %s19, 1
      %s27 = ssub.s32 %s19, %s26
      %p28 = scmp.eq.s32.totalorder %s27, 0
      %s30 = sadd.s32 %s29, 1
      %s31 = scalar_select %p28, %s29, %s30
      %p34 = pneg %p28
      %p35 = scmp.eq.s32.totalorder %s19, 1
      %p36 = por %p34, %p35
      %p37 = scmp.ne.s32.totalorder %s29, %s32
      %p38 = scmp.eq.s32.totalorder %s19, 0
      %p39 = por %p37, %p38
      %p40 = scmp.ne.s32.totalorder %s29, %s32
      %p41 = scmp.eq.s32.totalorder %s24, 1
      %p42 = por %p40, %p41
      %p43 = scmp.ne.s32.totalorder %s32, %s33
      %p44 = scmp.eq.s32.totalorder %s24, 0
      %p45 = por %p43, %p44
      %p46 = scmp.ne.s32.totalorder %s32, %s33
      %p47 = scmp.eq.s32.totalorder %s25, 1
      %p48 = por %p46, %p47
      %p50 = scmp.ne.s32.totalorder %s33, %s49
      %p51 = scmp.eq.s32.totalorder %s25, 0
      %p52 = por %p50, %p51
      %s54 = sadd.s32 %s53, 1
      %p57 = scmp.eq.s32.totalorder %s19, 1
      %p58 = scmp.ne.s32.totalorder %s53, %s55
      %p59 = scmp.eq.s32.totalorder %s19, 0
      %p60 = por %p58, %p59
      %p61 = scmp.ne.s32.totalorder %s53, %s55
      %p62 = scmp.eq.s32.totalorder %s24, 1
      %p63 = por %p61, %p62
      %p64 = scmp.ne.s32.totalorder %s55, %s56
      %p65 = scmp.eq.s32.totalorder %s24, 0
      %p66 = por %p64, %p65
      %p67 = scmp.ne.s32.totalorder %s55, %s56
      %p68 = scmp.eq.s32.totalorder %s25, 1
      %p69 = por %p67, %p68
      %p71 = scmp.ne.s32.totalorder %s56, %s70
      %p72 = scmp.eq.s32.totalorder %s25, 0
      %p73 = por %p71, %p72
      %s75 = sadd.s32 %s74, 1
      %p78 = scmp.eq.s32.totalorder %s19, 1
      %p79 = scmp.ne.s32.totalorder %s74, %s76
      %p80 = scmp.eq.s32.totalorder %s19, 0
      %p81 = por %p79, %p80
      %p82 = scmp.ne.s32.totalorder %s74, %s76
      %p83 = scmp.eq.s32.totalorder %s24, 1
      %p84 = por %p82, %p83
      %p85 = scmp.ne.s32.totalorder %s76, %s77
      %p86 = scmp.eq.s32.totalorder %s24, 0
      %p87 = por %p85, %p86
      %p88 = scmp.ne.s32.totalorder %s76, %s77
      %p89 = scmp.eq.s32.totalorder %s25, 1
      %p90 = por %p88, %p89
      %p92 = scmp.ne.s32.totalorder %s77, %s91
      %p93 = scmp.eq.s32.totalorder %s25, 0
      %p94 = por %p92, %p93
      %s96 = sadd.s32 %s95, 1
      %p99 = scmp.eq.s32.totalorder %s19, 1
      %p100 = scmp.ne.s32.totalorder %s95, %s97
      %p101 = scmp.eq.s32.totalorder %s19, 0
      %p102 = por %p100, %p101
      %p103 = scmp.ne.s32.totalorder %s95, %s97
      %p104 = scmp.eq.s32.totalorder %s24, 1
      %p105 = por %p103, %p104
      %p106 = scmp.ne.s32.totalorder %s97, %s98
      %p107 = scmp.eq.s32.totalorder %s24, 0
      %p108 = por %p106, %p107
      %p109 = scmp.ne.s32.totalorder %s97, %s98
      %p110 = scmp.eq.s32.totalorder %s25, 1
      %p111 = por %p109, %p110
      %p113 = scmp.ne.s32.totalorder %s98, %s112
      %p114 = scmp.eq.s32.totalorder %s25, 0
      %p115 = por %p113, %p114
      %s117 = sadd.s32 %s116, 1
      %p120 = scmp.eq.s32.totalorder %s19, 1
      %p121 = scmp.ne.s32.totalorder %s116, %s118
      %p122 = scmp.eq.s32.totalorder %s19, 0
      %p123 = por %p121, %p122
      %p124 = scmp.ne.s32.totalorder %s116, %s118
      %p125 = scmp.eq.s32.totalorder %s24, 1
      %p126 = por %p124, %p125
      %p127 = scmp.ne.s32.totalorder %s118, %s119
      %p128 = scmp.eq.s32.totalorder %s24, 0
      %p129 = por %p127, %p128
      %p130 = scmp.ne.s32.totalorder %s118, %s119
      %p131 = scmp.eq.s32.totalorder %s25, 1
      %p132 = por %p130, %p131
      %p134 = scmp.ne.s32.totalorder %s119, %s133
      %p135 = scmp.eq.s32.totalorder %s25, 0
      %p136 = por %p134, %p135
      %s137 = ssub.s32 %s19, %s26
      %p138 = scmp.eq.s32.totalorder %s137, 0
      %s140 = sadd.s32 %s139, 1
      %s141 = scalar_select %p138, %s139, %s140
      %p144 = pneg %p138
      %p145 = scmp.eq.s32.totalorder %s19, 1
      %p146 = por %p144, %p145
      %p147 = scmp.ne.s32.totalorder %s139, %s142
      %p148 = scmp.eq.s32.totalorder %s19, 0
      %p149 = por %p147, %p148
      %p150 = scmp.ne.s32.totalorder %s139, %s142
      %p151 = scmp.eq.s32.totalorder %s24, 1
      %p152 = por %p150, %p151
      %p153 = scmp.ne.s32.totalorder %s142, %s143
      %p154 = scmp.eq.s32.totalorder %s24, 0
      %p155 = por %p153, %p154
      %p156 = scmp.ne.s32.totalorder %s142, %s143
      %p157 = scmp.eq.s32.totalorder %s25, 1
      %p158 = por %p156, %p157
      %p160 = scmp.ne.s32.totalorder %s143, %s159
      %p161 = scmp.eq.s32.totalorder %s25, 0
      %p162 = por %p160, %p161
      %p163 = scmp.le.s32.totalorder 1, %s19
      %p164 = scmp.lt.s32.totalorder %s19, 3
      %p165 = pnand %p163, %p164
      %p166 = pneg %p165
      // Predicated region
      $region9: #{tpu_custom_call.1} parent=5 // pred_check
        _
      $region10: #{tpu_custom_call.1} parent=5 // pred_check_branch
        %168 = sbr.rel (%p165) target = $region12
      $region11: #{tpu_custom_call.1} parent=5 // pred_region
        %s169 = ssub.s32 %s19, 1
        // Predicated region
        $region13: #{tpu_custom_call.1} parent=11 // pred_check
          %p170 = pneg %p66
        $region14: #{tpu_custom_call.1} parent=11 // pred_check_branch
          %172 = sbr.rel (%p170) target = $region16
        $region15: #{tpu_custom_call.1} parent=11 // pred_region
          %s174 = ssub.s32 40960, 40960
          %175 = vsyncadd [#allocation6], %s174
          %s176 = sshll.u32 [#allocation5], 4
          %s177 = int_to_ptr.vmem [resolvable:$true] %s176
          %182 = dma.hbm_to_vmem [thread:$0]  %s1, 40960, %s177, [#allocation6], 320, 320, 20
        $region16: #{tpu_custom_call.1} parent=11 // pred_fallthru
          _
        // Predicated region
        $region17: #{tpu_custom_call.1} parent=11 // pred_check
          %p183 = pneg %p87
        $region18: #{tpu_custom_call.1} parent=11 // pred_check_branch
          %185 = sbr.rel (%p183) target = $region20
        $region19: #{tpu_custom_call.1} parent=11 // pred_region
          %s187 = ssub.s32 16, 16
          %188 = vsyncadd [#allocation6], %s187
          %s190 = sshll.u32 [#allocation7], 4
          %s191 = int_to_ptr.vmem [resolvable:$true] %s190
          %193 = dma.hbm_to_vmem [thread:$0]  %s2, 16, %s191, [#allocation6]
        $region20: #{tpu_custom_call.1} parent=11 // pred_fallthru
          _
        // Predicated region
        $region21: #{tpu_custom_call.1} parent=11 // pred_check
          %p194 = pneg %p108
        $region22: #{tpu_custom_call.1} parent=11 // pred_check_branch
          %196 = sbr.rel (%p194) target = $region24
        $region23: #{tpu_custom_call.1} parent=11 // pred_region
          %s198 = ssub.s32 2048, 2048
          %199 = vsyncadd [#allocation9], %s198
          %s200 = sshll.u32 [#allocation8], 4
          %s201 = int_to_ptr.vmem [resolvable:$true] %s200
          %206 = dma.hbm_to_vmem [thread:$0]  %s3, 2048, %s201, [#allocation9], 128, 128, 8
        $region24: #{tpu_custom_call.1} parent=11 // pred_fallthru
          _
        // Predicated region
        $region25: #{tpu_custom_call.1} parent=11 // pred_check
          %p207 = pneg %p129
        $region26: #{tpu_custom_call.1} parent=11 // pred_check_branch
          %209 = sbr.rel (%p207) target = $region28
        $region27: #{tpu_custom_call.1} parent=11 // pred_region
          %s211 = ssub.s32 16, 16
          %212 = vsyncadd [#allocation9], %s211
          %s214 = sshll.u32 [#allocation10], 4
          %s215 = int_to_ptr.vmem [resolvable:$true] %s214
          %217 = dma.hbm_to_vmem [thread:$0]  %s4, 16, %s215, [#allocation9]
        $region28: #{tpu_custom_call.1} parent=11 // pred_fallthru
          _
      $region12: #{tpu_custom_call.1} parent=5 // pred_fallthru
        _
      %p218 = scmp.lt.s32.totalorder %s19, 2
      // Predicated region
      $region29: #{tpu_custom_call.1} parent=5 // pred_check
        %p219 = pneg %p218
      $region30: #{tpu_custom_call.1} parent=5 // pred_check_branch
        %221 = sbr.rel (%p219) target = $region32
      $region31: #{tpu_custom_call.1} parent=5 // pred_region
        // Predicated region
        $region33: #{tpu_custom_call.1} parent=31 // pred_check
          %p222 = pneg %p39
        $region34: #{tpu_custom_call.1} parent=31 // pred_check_branch
          %224 = sbr.rel (%p222) target = $region36
        $region35: #{tpu_custom_call.1} parent=31 // pred_region
          %s225 = sand.u32 %s29, 1
          %s226 = scalar_lea.sflag [#allocation3], %s225
          %s227 = sand.u32 %s29, 1
          %s228 = smul.addr %s227, 64
          %s229 = scalar_lea.vmem [#allocation2], %s228
          %s231 = ssub.s32 1024, 1024
          %232 = vsyncadd %s226, %s231
          %s233 = smul.addr %s19, 16
          %s234 = smul.addr %s233, 64
          %s235 = scalar_lea.hbm %s0, %s234
          %s236 = sshll.u32 %s229, 4
          %s237 = int_to_ptr.vmem [resolvable:$true] %s236
          %242 = dma.hbm_to_vmem [thread:$0]  %s235, 1024, %s237, %s226, 512, 512, 32
        $region36: #{tpu_custom_call.1} parent=31 // pred_fallthru
          _
      $region32: #{tpu_custom_call.1} parent=5 // pred_fallthru
        _
      %p243 = scmp.le.s32.totalorder 1, %s19
      %p244 = scmp.lt.s32.totalorder %s19, 3
      %p245 = pnand %p243, %p244
      %p246 = pneg %p245
      // Predicated region
      $region37: #{tpu_custom_call.1} parent=5 // pred_check
        _
      $region38: #{tpu_custom_call.1} parent=5 // pred_check_branch
        %248 = sbr.rel (%p245) target = $region40
      $region39: #{tpu_custom_call.1} parent=5 // pred_region
        %s249 = ssub.s32 %s19, 1
        %s250 = sand.u32 %s32, 1
        %s251 = scalar_lea.sflag [#allocation3], %s250
        %s252 = sand.u32 %s32, 1
        %s253 = smul.addr %s252, 64
        %s254 = scalar_lea.vmem [#allocation2], %s253
        // Predicated region
        $region41: #{tpu_custom_call.1} parent=39 // pred_check
          %p255 = pneg %p45
        $region42: #{tpu_custom_call.1} parent=39 // pred_check_branch
          %257 = sbr.rel (%p255) target = $region44
        $region43: #{tpu_custom_call.1} parent=39 // pred_region
          %258 = dma.done %s251, 1024
        $region44: #{tpu_custom_call.1} parent=39 // pred_fallthru
          _
        // Predicated region
        $region45: #{tpu_custom_call.1} parent=39 // pred_check
          %p259 = pneg %p66
        $region46: #{tpu_custom_call.1} parent=39 // pred_check_branch
          %261 = sbr.rel (%p259) target = $region48
        $region47: #{tpu_custom_call.1} parent=39 // pred_region
          %262 = dma.done [#allocation6], 40960
        $region48: #{tpu_custom_call.1} parent=39 // pred_fallthru
          _
        // Predicated region
        $region49: #{tpu_custom_call.1} parent=39 // pred_check
          %p263 = pneg %p87
        $region50: #{tpu_custom_call.1} parent=39 // pred_check_branch
          %265 = sbr.rel (%p263) target = $region52
        $region51: #{tpu_custom_call.1} parent=39 // pred_region
          %266 = dma.done [#allocation6], 16
        $region52: #{tpu_custom_call.1} parent=39 // pred_fallthru
          _
        // Predicated region
        $region53: #{tpu_custom_call.1} parent=39 // pred_check
          %p267 = pneg %p108
        $region54: #{tpu_custom_call.1} parent=39 // pred_check_branch
          %269 = sbr.rel (%p267) target = $region56
        $region55: #{tpu_custom_call.1} parent=39 // pred_region
          %270 = dma.done [#allocation9], 2048
        $region56: #{tpu_custom_call.1} parent=39 // pred_fallthru
          _
        // Predicated region
        $region57: #{tpu_custom_call.1} parent=39 // pred_check
          %p271 = pneg %p129
        $region58: #{tpu_custom_call.1} parent=39 // pred_check_branch
          %273 = sbr.rel (%p271) target = $region60
        $region59: #{tpu_custom_call.1} parent=39 // pred_region
          %274 = dma.done [#allocation9], 16
        $region60: #{tpu_custom_call.1} parent=39 // pred_fallthru
          _
        %s275 = sand.u32 %s32, 1
        %s276 = scalar_lea.sflag [#allocation3], %s275
        %s277 = sand.u32 %s32, 1
        %s278 = smul.addr %s277, 64
        %s279 = scalar_lea.vmem [#allocation2], %s278
        %p280 = pneg %p45
        %p281 = pneg %p42
        %p282 = pneg %p66
        %p283 = pneg %p63
        %p284 = pneg %p87
        %p285 = pneg %p84
        %p286 = pneg %p108
        %p287 = pneg %p105
        %p288 = pneg %p129
        %p289 = pneg %p126
        %p290 = pneg %p155
        %p291 = pneg %p152
        %s292 = sand.u32 %s142, 1
        %s293 = scalar_lea.sflag [#allocation4], %s292
        %s294 = sand.u32 %s142, 1
        %s295 = scalar_lea.vmem [#allocation11], %s294
        %v297 = vld [vmem:[%s254] sm:$0xff]
        %v298 = vld [vmem:[%s254 + $0x8] sm:$0xff]
        %v299 = vld [vmem:[%s254 + $0x10] sm:$0xff]
        %v300 = vld [vmem:[%s254 + $0x18] sm:$0xff]
        %v301 = vld [vmem:[%s254 + $0x20] sm:$0xff]
        %v302 = vld [vmem:[%s254 + $0x28] sm:$0xff]
        %v303 = vld [vmem:[%s254 + $0x30] sm:$0xff]
        %v304 = vld [vmem:[%s254 + $0x38] sm:$0xff]
        %v305 = vld [vmem:[#allocation5] sm:$0xff]
        %v306 = vld [vmem:[#allocation5 + $0x8] sm:$0xff]
        %v307 = vld [vmem:[#allocation5 + $0x10] sm:$0xf]
        %v308 = vld [vmem:[#allocation5 + $0x14] sm:$0xff]
        %v309 = vld [vmem:[#allocation5 + $0x1c] sm:$0xff]
        %v310 = vld [vmem:[#allocation5 + $0x24] sm:$0xf]
        %v311 = vld [vmem:[#allocation5 + $0x28] sm:$0xff]
        %v312 = vld [vmem:[#allocation5 + $0x30] sm:$0xff]
        %v313 = vld [vmem:[#allocation5 + $0x38] sm:$0xf]
        %v314 = vld [vmem:[#allocation5 + $0x3c] sm:$0xff]
        %v315 = vld [vmem:[#allocation5 + $0x44] sm:$0xff]
        %v316 = vld [vmem:[#allocation5 + $0x4c] sm:$0xf]
        %v317 = vld [vmem:[#allocation5 + $0x50] sm:$0xff]
        %v318 = vld [vmem:[#allocation5 + $0x58] sm:$0xff]
        %v319 = vld [vmem:[#allocation5 + $0x60] sm:$0xf]
        %v320 = vld [vmem:[#allocation5 + $0x64] sm:$0xff]
        %v321 = vld [vmem:[#allocation5 + $0x6c] sm:$0xff]
        %v322 = vld [vmem:[#allocation5 + $0x74] sm:$0xf]
        %v323 = vld [vmem:[#allocation5 + $0x78] sm:$0xff]
        %v324 = vld [vmem:[#allocation5 + $0x80] sm:$0xff]
        %v325 = vld [vmem:[#allocation5 + $0x88] sm:$0xf]
        %v326 = vld [vmem:[#allocation5 + $0x8c] sm:$0xff]
        %v327 = vld [vmem:[#allocation5 + $0x94] sm:$0xff]
        %v328 = vld [vmem:[#allocation5 + $0x9c] sm:$0xf]
        %v329 = vld [vmem:[#allocation5 + $0xa0] sm:$0xff]
        %v330 = vld [vmem:[#allocation5 + $0xa8] sm:$0xff]
        %v331 = vld [vmem:[#allocation5 + $0xb0] sm:$0xf]
        %v332 = vld [vmem:[#allocation5 + $0xb4] sm:$0xff]
        %v333 = vld [vmem:[#allocation5 + $0xbc] sm:$0xff]
        %v334 = vld [vmem:[#allocation5 + $0xc4] sm:$0xf]
        %v335 = vld [vmem:[#allocation5 + $0xc8] sm:$0xff]
        %v336 = vld [vmem:[#allocation5 + $0xd0] sm:$0xff]
        %v337 = vld [vmem:[#allocation5 + $0xd8] sm:$0xf]
        %v338 = vld [vmem:[#allocation5 + $0xdc] sm:$0xff]
        %v339 = vld [vmem:[#allocation5 + $0xe4] sm:$0xff]
        %v340 = vld [vmem:[#allocation5 + $0xec] sm:$0xf]
        %v341 = vld [vmem:[#allocation5 + $0xf0] sm:$0xff]
        %v342 = vld [vmem:[#allocation5 + $0xf8] sm:$0xff]
        %v343 = vld [vmem:[#allocation5 + $0x100] sm:$0xf]
        %v344 = vld [vmem:[#allocation5 + $0x104] sm:$0xff]
        %v345 = vld [vmem:[#allocation5 + $0x10c] sm:$0xff]
        %v346 = vld [vmem:[#allocation5 + $0x114] sm:$0xf]
        %v347 = vld [vmem:[#allocation5 + $0x118] sm:$0xff]
        %v348 = vld [vmem:[#allocation5 + $0x120] sm:$0xff]
        %v349 = vld [vmem:[#allocation5 + $0x128] sm:$0xf]
        %v350 = vld [vmem:[#allocation5 + $0x12c] sm:$0xff]
        %v351 = vld [vmem:[#allocation5 + $0x134] sm:$0xff]
        %v352 = vld [vmem:[#allocation5 + $0x13c] sm:$0xf]
        %v353 = vld [vmem:[#allocation5 + $0x140] sm:$0xff]
        %v354 = vld [vmem:[#allocation5 + $0x148] sm:$0xff]
        %v355 = vld [vmem:[#allocation5 + $0x150] sm:$0xf]
        %v356 = vld [vmem:[#allocation5 + $0x154] sm:$0xff]
        %v357 = vld [vmem:[#allocation5 + $0x15c] sm:$0xff]
        %v358 = vld [vmem:[#allocation5 + $0x164] sm:$0xf]
        %v359 = vld [vmem:[#allocation5 + $0x168] sm:$0xff]
        %v360 = vld [vmem:[#allocation5 + $0x170] sm:$0xff]
        %v361 = vld [vmem:[#allocation5 + $0x178] sm:$0xf]
        %v362 = vld [vmem:[#allocation5 + $0x17c] sm:$0xff]
        %v363 = vld [vmem:[#allocation5 + $0x184] sm:$0xff]
        %v364 = vld [vmem:[#allocation5 + $0x18c] sm:$0xf]
        %v365 = vld [vmem:[#allocation5 + $0x190] sm:$0xff]
        %v366 = vld [vmem:[#allocation5 + $0x198] sm:$0xff]
        %v367 = vld [vmem:[#allocation5 + $0x1a0] sm:$0xf]
        %v368 = vld [vmem:[#allocation5 + $0x1a4] sm:$0xff]
        %v369 = vld [vmem:[#allocation5 + $0x1ac] sm:$0xff]
        %v370 = vld [vmem:[#allocation5 + $0x1b4] sm:$0xf]
        %v371 = vld [vmem:[#allocation5 + $0x1b8] sm:$0xff]
        %v372 = vld [vmem:[#allocation5 + $0x1c0] sm:$0xff]
        %v373 = vld [vmem:[#allocation5 + $0x1c8] sm:$0xf]
        %v374 = vld [vmem:[#allocation5 + $0x1cc] sm:$0xff]
        %v375 = vld [vmem:[#allocation5 + $0x1d4] sm:$0xff]
        %v376 = vld [vmem:[#allocation5 + $0x1dc] sm:$0xf]
        %v377 = vld [vmem:[#allocation5 + $0x1e0] sm:$0xff]
        %v378 = vld [vmem:[#allocation5 + $0x1e8] sm:$0xff]
        %v379 = vld [vmem:[#allocation5 + $0x1f0] sm:$0xf]
        %v380 = vld [vmem:[#allocation5 + $0x1f4] sm:$0xff]
        %v381 = vld [vmem:[#allocation5 + $0x1fc] sm:$0xff]
        %v382 = vld [vmem:[#allocation5 + $0x204] sm:$0xf]
        %v383 = vld [vmem:[#allocation5 + $0x208] sm:$0xff]
        %v384 = vld [vmem:[#allocation5 + $0x210] sm:$0xff]
        %v385 = vld [vmem:[#allocation5 + $0x218] sm:$0xf]
        %v386 = vld [vmem:[#allocation5 + $0x21c] sm:$0xff]
        %v387 = vld [vmem:[#allocation5 + $0x224] sm:$0xff]
        %v388 = vld [vmem:[#allocation5 + $0x22c] sm:$0xf]
        %v389 = vld [vmem:[#allocation5 + $0x230] sm:$0xff]
        %v390 = vld [vmem:[#allocation5 + $0x238] sm:$0xff]
        %v391 = vld [vmem:[#allocation5 + $0x240] sm:$0xf]
        %v392 = vld [vmem:[#allocation5 + $0x244] sm:$0xff]
        %v393 = vld [vmem:[#allocation5 + $0x24c] sm:$0xff]
        %v394 = vld [vmem:[#allocation5 + $0x254] sm:$0xf]
        %v395 = vld [vmem:[#allocation5 + $0x258] sm:$0xff]
        %v396 = vld [vmem:[#allocation5 + $0x260] sm:$0xff]
        %v397 = vld [vmem:[#allocation5 + $0x268] sm:$0xf]
        %v398 = vld [vmem:[#allocation5 + $0x26c] sm:$0xff]
        %v399 = vld [vmem:[#allocation5 + $0x274] sm:$0xff]
        %v400 = vld [vmem:[#allocation5 + $0x27c] sm:$0xf]
        %v401 = vld [vmem:[#allocation5 + $0x280] sm:$0xff]
        %v402 = vld [vmem:[#allocation5 + $0x288] sm:$0xff]
        %v403 = vld [vmem:[#allocation5 + $0x290] sm:$0xf]
        %v404 = vld [vmem:[#allocation5 + $0x294] sm:$0xff]
        %v405 = vld [vmem:[#allocation5 + $0x29c] sm:$0xff]
        %v406 = vld [vmem:[#allocation5 + $0x2a4] sm:$0xf]
        %v407 = vld [vmem:[#allocation5 + $0x2a8] sm:$0xff]
        %v408 = vld [vmem:[#allocation5 + $0x2b0] sm:$0xff]
        %v409 = vld [vmem:[#allocation5 + $0x2b8] sm:$0xf]
        %v410 = vld [vmem:[#allocation5 + $0x2bc] sm:$0xff]
        %v411 = vld [vmem:[#allocation5 + $0x2c4] sm:$0xff]
        %v412 = vld [vmem:[#allocation5 + $0x2cc] sm:$0xf]
        %v413 = vld [vmem:[#allocation5 + $0x2d0] sm:$0xff]
        %v414 = vld [vmem:[#allocation5 + $0x2d8] sm:$0xff]
        %v415 = vld [vmem:[#allocation5 + $0x2e0] sm:$0xf]
        %v416 = vld [vmem:[#allocation5 + $0x2e4] sm:$0xff]
        %v417 = vld [vmem:[#allocation5 + $0x2ec] sm:$0xff]
        %v418 = vld [vmem:[#allocation5 + $0x2f4] sm:$0xf]
        %v419 = vld [vmem:[#allocation5 + $0x2f8] sm:$0xff]
        %v420 = vld [vmem:[#allocation5 + $0x300] sm:$0xff]
        %v421 = vld [vmem:[#allocation5 + $0x308] sm:$0xf]
        %v422 = vld [vmem:[#allocation5 + $0x30c] sm:$0xff]
        %v423 = vld [vmem:[#allocation5 + $0x314] sm:$0xff]
        %v424 = vld [vmem:[#allocation5 + $0x31c] sm:$0xf]
        %v425 = vld [vmem:[#allocation5 + $0x320] sm:$0xff]
        %v426 = vld [vmem:[#allocation5 + $0x328] sm:$0xff]
        %v427 = vld [vmem:[#allocation5 + $0x330] sm:$0xf]
        %v428 = vld [vmem:[#allocation5 + $0x334] sm:$0xff]
        %v429 = vld [vmem:[#allocation5 + $0x33c] sm:$0xff]
        %v430 = vld [vmem:[#allocation5 + $0x344] sm:$0xf]
        %v431 = vld [vmem:[#allocation5 + $0x348] sm:$0xff]
        %v432 = vld [vmem:[#allocation5 + $0x350] sm:$0xff]
        %v433 = vld [vmem:[#allocation5 + $0x358] sm:$0xf]
        %v434 = vld [vmem:[#allocation5 + $0x35c] sm:$0xff]
        %v435 = vld [vmem:[#allocation5 + $0x364] sm:$0xff]
        %v436 = vld [vmem:[#allocation5 + $0x36c] sm:$0xf]
        %v437 = vld [vmem:[#allocation5 + $0x370] sm:$0xff]
        %v438 = vld [vmem:[#allocation5 + $0x378] sm:$0xff]
        %v439 = vld [vmem:[#allocation5 + $0x380] sm:$0xf]
        %v440 = vld [vmem:[#allocation5 + $0x384] sm:$0xff]
        %v441 = vld [vmem:[#allocation5 + $0x38c] sm:$0xff]
        %v442 = vld [vmem:[#allocation5 + $0x394] sm:$0xf]
        %v443 = vld [vmem:[#allocation5 + $0x398] sm:$0xff]
        %v444 = vld [vmem:[#allocation5 + $0x3a0] sm:$0xff]
        %v445 = vld [vmem:[#allocation5 + $0x3a8] sm:$0xf]
        %v446 = vld [vmem:[#allocation5 + $0x3ac] sm:$0xff]
        %v447 = vld [vmem:[#allocation5 + $0x3b4] sm:$0xff]
        %v448 = vld [vmem:[#allocation5 + $0x3bc] sm:$0xf]
        %v449 = vld [vmem:[#allocation5 + $0x3c0] sm:$0xff]
        %v450 = vld [vmem:[#allocation5 + $0x3c8] sm:$0xff]
        %v451 = vld [vmem:[#allocation5 + $0x3d0] sm:$0xf]
        %v452 = vld [vmem:[#allocation5 + $0x3d4] sm:$0xff]
        %v453 = vld [vmem:[#allocation5 + $0x3dc] sm:$0xff]
        %v454 = vld [vmem:[#allocation5 + $0x3e4] sm:$0xf]
        %v455 = vld [vmem:[#allocation5 + $0x3e8] sm:$0xff]
        %v456 = vld [vmem:[#allocation5 + $0x3f0] sm:$0xff]
        %v457 = vld [vmem:[#allocation5 + $0x3f8] sm:$0xf]
        %v458 = vld [vmem:[#allocation5 + $0x3fc] sm:$0xff]
        %v459 = vld [vmem:[#allocation5 + $0x404] sm:$0xff]
        %v460 = vld [vmem:[#allocation5 + $0x40c] sm:$0xf]
        %v461 = vld [vmem:[#allocation5 + $0x410] sm:$0xff]
        %v462 = vld [vmem:[#allocation5 + $0x418] sm:$0xff]
        %v463 = vld [vmem:[#allocation5 + $0x420] sm:$0xf]
        %v464 = vld [vmem:[#allocation5 + $0x424] sm:$0xff]
        %v465 = vld [vmem:[#allocation5 + $0x42c] sm:$0xff]
        %v466 = vld [vmem:[#allocation5 + $0x434] sm:$0xf]
        %v467 = vld [vmem:[#allocation5 + $0x438] sm:$0xff]
        %v468 = vld [vmem:[#allocation5 + $0x440] sm:$0xff]
        %v469 = vld [vmem:[#allocation5 + $0x448] sm:$0xf]
        %v470 = vld [vmem:[#allocation5 + $0x44c] sm:$0xff]
        %v471 = vld [vmem:[#allocation5 + $0x454] sm:$0xff]
        %v472 = vld [vmem:[#allocation5 + $0x45c] sm:$0xf]
        %v473 = vld [vmem:[#allocation5 + $0x460] sm:$0xff]
        %v474 = vld [vmem:[#allocation5 + $0x468] sm:$0xff]
        %v475 = vld [vmem:[#allocation5 + $0x470] sm:$0xf]
        %v476 = vld [vmem:[#allocation5 + $0x474] sm:$0xff]
        %v477 = vld [vmem:[#allocation5 + $0x47c] sm:$0xff]
        %v478 = vld [vmem:[#allocation5 + $0x484] sm:$0xf]
        %v479 = vld [vmem:[#allocation5 + $0x488] sm:$0xff]
        %v480 = vld [vmem:[#allocation5 + $0x490] sm:$0xff]
        %v481 = vld [vmem:[#allocation5 + $0x498] sm:$0xf]
        %v482 = vld [vmem:[#allocation5 + $0x49c] sm:$0xff]
        %v483 = vld [vmem:[#allocation5 + $0x4a4] sm:$0xff]
        %v484 = vld [vmem:[#allocation5 + $0x4ac] sm:$0xf]
        %v485 = vld [vmem:[#allocation5 + $0x4b0] sm:$0xff]
        %v486 = vld [vmem:[#allocation5 + $0x4b8] sm:$0xff]
        %v487 = vld [vmem:[#allocation5 + $0x4c0] sm:$0xf]
        %v488 = vld [vmem:[#allocation5 + $0x4c4] sm:$0xff]
        %v489 = vld [vmem:[#allocation5 + $0x4cc] sm:$0xff]
        %v490 = vld [vmem:[#allocation5 + $0x4d4] sm:$0xf]
        %v491 = vld [vmem:[#allocation5 + $0x4d8] sm:$0xff]
        %v492 = vld [vmem:[#allocation5 + $0x4e0] sm:$0xff]
        %v493 = vld [vmem:[#allocation5 + $0x4e8] sm:$0xf]
        %v494 = vld [vmem:[#allocation5 + $0x4ec] sm:$0xff]
        %v495 = vld [vmem:[#allocation5 + $0x4f4] sm:$0xff]
        %v496 = vld [vmem:[#allocation5 + $0x4fc] sm:$0xf]
        %v497 = vld [vmem:[#allocation5 + $0x500] sm:$0xff]
        %v498 = vld [vmem:[#allocation5 + $0x508] sm:$0xff]
        %v499 = vld [vmem:[#allocation5 + $0x510] sm:$0xf]
        %v500 = vld [vmem:[#allocation5 + $0x514] sm:$0xff]
        %v501 = vld [vmem:[#allocation5 + $0x51c] sm:$0xff]
        %v502 = vld [vmem:[#allocation5 + $0x524] sm:$0xf]
        %v503 = vld [vmem:[#allocation5 + $0x528] sm:$0xff]
        %v504 = vld [vmem:[#allocation5 + $0x530] sm:$0xff]
        %v505 = vld [vmem:[#allocation5 + $0x538] sm:$0xf]
        %v506 = vld [vmem:[#allocation5 + $0x53c] sm:$0xff]
        %v507 = vld [vmem:[#allocation5 + $0x544] sm:$0xff]
        %v508 = vld [vmem:[#allocation5 + $0x54c] sm:$0xf]
        %v509 = vld [vmem:[#allocation5 + $0x550] sm:$0xff]
        %v510 = vld [vmem:[#allocation5 + $0x558] sm:$0xff]
        %v511 = vld [vmem:[#allocation5 + $0x560] sm:$0xf]
        %v512 = vld [vmem:[#allocation5 + $0x564] sm:$0xff]
        %v513 = vld [vmem:[#allocation5 + $0x56c] sm:$0xff]
        %v514 = vld [vmem:[#allocation5 + $0x574] sm:$0xf]
        %v515 = vld [vmem:[#allocation5 + $0x578] sm:$0xff]
        %v516 = vld [vmem:[#allocation5 + $0x580] sm:$0xff]
        %v517 = vld [vmem:[#allocation5 + $0x588] sm:$0xf]
        %v518 = vld [vmem:[#allocation5 + $0x58c] sm:$0xff]
        %v519 = vld [vmem:[#allocation5 + $0x594] sm:$0xff]
        %v520 = vld [vmem:[#allocation5 + $0x59c] sm:$0xf]
        %v521 = vld [vmem:[#allocation5 + $0x5a0] sm:$0xff]
        %v522 = vld [vmem:[#allocation5 + $0x5a8] sm:$0xff]
        %v523 = vld [vmem:[#allocation5 + $0x5b0] sm:$0xf]
        %v524 = vld [vmem:[#allocation5 + $0x5b4] sm:$0xff]
        %v525 = vld [vmem:[#allocation5 + $0x5bc] sm:$0xff]
        %v526 = vld [vmem:[#allocation5 + $0x5c4] sm:$0xf]
        %v527 = vld [vmem:[#allocation5 + $0x5c8] sm:$0xff]
        %v528 = vld [vmem:[#allocation5 + $0x5d0] sm:$0xff]
        %v529 = vld [vmem:[#allocation5 + $0x5d8] sm:$0xf]
        %v530 = vld [vmem:[#allocation5 + $0x5dc] sm:$0xff]
        %v531 = vld [vmem:[#allocation5 + $0x5e4] sm:$0xff]
        %v532 = vld [vmem:[#allocation5 + $0x5ec] sm:$0xf]
        %v533 = vld [vmem:[#allocation5 + $0x5f0] sm:$0xff]
        %v534 = vld [vmem:[#allocation5 + $0x5f8] sm:$0xff]
        %v535 = vld [vmem:[#allocation5 + $0x600] sm:$0xf]
        %v536 = vld [vmem:[#allocation5 + $0x604] sm:$0xff]
        %v537 = vld [vmem:[#allocation5 + $0x60c] sm:$0xff]
        %v538 = vld [vmem:[#allocation5 + $0x614] sm:$0xf]
        %v539 = vld [vmem:[#allocation5 + $0x618] sm:$0xff]
        %v540 = vld [vmem:[#allocation5 + $0x620] sm:$0xff]
        %v541 = vld [vmem:[#allocation5 + $0x628] sm:$0xf]
        %v542 = vld [vmem:[#allocation5 + $0x62c] sm:$0xff]
        %v543 = vld [vmem:[#allocation5 + $0x634] sm:$0xff]
        %v544 = vld [vmem:[#allocation5 + $0x63c] sm:$0xf]
        %v545 = vld [vmem:[#allocation5 + $0x640] sm:$0xff]
        %v546 = vld [vmem:[#allocation5 + $0x648] sm:$0xff]
        %v547 = vld [vmem:[#allocation5 + $0x650] sm:$0xf]
        %v548 = vld [vmem:[#allocation5 + $0x654] sm:$0xff]
        %v549 = vld [vmem:[#allocation5 + $0x65c] sm:$0xff]
        %v550 = vld [vmem:[#allocation5 + $0x664] sm:$0xf]
        %v551 = vld [vmem:[#allocation5 + $0x668] sm:$0xff]
        %v552 = vld [vmem:[#allocation5 + $0x670] sm:$0xff]
        %v553 = vld [vmem:[#allocation5 + $0x678] sm:$0xf]
        %v554 = vld [vmem:[#allocation5 + $0x67c] sm:$0xff]
        %v555 = vld [vmem:[#allocation5 + $0x684] sm:$0xff]
        %v556 = vld [vmem:[#allocation5 + $0x68c] sm:$0xf]
        %v557 = vld [vmem:[#allocation5 + $0x690] sm:$0xff]
        %v558 = vld [vmem:[#allocation5 + $0x698] sm:$0xff]
        %v559 = vld [vmem:[#allocation5 + $0x6a0] sm:$0xf]
        %v560 = vld [vmem:[#allocation5 + $0x6a4] sm:$0xff]
        %v561 = vld [vmem:[#allocation5 + $0x6ac] sm:$0xff]
        %v562 = vld [vmem:[#allocation5 + $0x6b4] sm:$0xf]
        %v563 = vld [vmem:[#allocation5 + $0x6b8] sm:$0xff]
        %v564 = vld [vmem:[#allocation5 + $0x6c0] sm:$0xff]
        %v565 = vld [vmem:[#allocation5 + $0x6c8] sm:$0xf]
        %v566 = vld [vmem:[#allocation5 + $0x6cc] sm:$0xff]
        %v567 = vld [vmem:[#allocation5 + $0x6d4] sm:$0xff]
        %v568 = vld [vmem:[#allocation5 + $0x6dc] sm:$0xf]
        %v569 = vld [vmem:[#allocation5 + $0x6e0] sm:$0xff]
        %v570 = vld [vmem:[#allocation5 + $0x6e8] sm:$0xff]
        %v571 = vld [vmem:[#allocation5 + $0x6f0] sm:$0xf]
        %v572 = vld [vmem:[#allocation5 + $0x6f4] sm:$0xff]
        %v573 = vld [vmem:[#allocation5 + $0x6fc] sm:$0xff]
        %v574 = vld [vmem:[#allocation5 + $0x704] sm:$0xf]
        %v575 = vld [vmem:[#allocation5 + $0x708] sm:$0xff]
        %v576 = vld [vmem:[#allocation5 + $0x710] sm:$0xff]
        %v577 = vld [vmem:[#allocation5 + $0x718] sm:$0xf]
        %v578 = vld [vmem:[#allocation5 + $0x71c] sm:$0xff]
        %v579 = vld [vmem:[#allocation5 + $0x724] sm:$0xff]
        %v580 = vld [vmem:[#allocation5 + $0x72c] sm:$0xf]
        %v581 = vld [vmem:[#allocation5 + $0x730] sm:$0xff]
        %v582 = vld [vmem:[#allocation5 + $0x738] sm:$0xff]
        %v583 = vld [vmem:[#allocation5 + $0x740] sm:$0xf]
        %v584 = vld [vmem:[#allocation5 + $0x744] sm:$0xff]
        %v585 = vld [vmem:[#allocation5 + $0x74c] sm:$0xff]
        %v586 = vld [vmem:[#allocation5 + $0x754] sm:$0xf]
        %v587 = vld [vmem:[#allocation5 + $0x758] sm:$0xff]
        %v588 = vld [vmem:[#allocation5 + $0x760] sm:$0xff]
        %v589 = vld [vmem:[#allocation5 + $0x768] sm:$0xf]
        %v590 = vld [vmem:[#allocation5 + $0x76c] sm:$0xff]
        %v591 = vld [vmem:[#allocation5 + $0x774] sm:$0xff]
        %v592 = vld [vmem:[#allocation5 + $0x77c] sm:$0xf]
        %v593 = vld [vmem:[#allocation5 + $0x780] sm:$0xff]
        %v594 = vld [vmem:[#allocation5 + $0x788] sm:$0xff]
        %v595 = vld [vmem:[#allocation5 + $0x790] sm:$0xf]
        %v596 = vld [vmem:[#allocation5 + $0x794] sm:$0xff]
        %v597 = vld [vmem:[#allocation5 + $0x79c] sm:$0xff]
        %v598 = vld [vmem:[#allocation5 + $0x7a4] sm:$0xf]
        %v599 = vld [vmem:[#allocation5 + $0x7a8] sm:$0xff]
        %v600 = vld [vmem:[#allocation5 + $0x7b0] sm:$0xff]
        %v601 = vld [vmem:[#allocation5 + $0x7b8] sm:$0xf]
        %v602 = vld [vmem:[#allocation5 + $0x7bc] sm:$0xff]
        %v603 = vld [vmem:[#allocation5 + $0x7c4] sm:$0xff]
        %v604 = vld [vmem:[#allocation5 + $0x7cc] sm:$0xf]
        %v605 = vld [vmem:[#allocation5 + $0x7d0] sm:$0xff]
        %v606 = vld [vmem:[#allocation5 + $0x7d8] sm:$0xff]
        %v607 = vld [vmem:[#allocation5 + $0x7e0] sm:$0xf]
        %v608 = vld [vmem:[#allocation5 + $0x7e4] sm:$0xff]
        %v609 = vld [vmem:[#allocation5 + $0x7ec] sm:$0xff]
        %v610 = vld [vmem:[#allocation5 + $0x7f4] sm:$0xf]
        %v611 = vld [vmem:[#allocation5 + $0x7f8] sm:$0xff]
        %v612 = vld [vmem:[#allocation5 + $0x800] sm:$0xff]
        %v613 = vld [vmem:[#allocation5 + $0x808] sm:$0xf]
        %v614 = vld [vmem:[#allocation5 + $0x80c] sm:$0xff]
        %v615 = vld [vmem:[#allocation5 + $0x814] sm:$0xff]
        %v616 = vld [vmem:[#allocation5 + $0x81c] sm:$0xf]
        %v617 = vld [vmem:[#allocation5 + $0x820] sm:$0xff]
        %v618 = vld [vmem:[#allocation5 + $0x828] sm:$0xff]
        %v619 = vld [vmem:[#allocation5 + $0x830] sm:$0xf]
        %v620 = vld [vmem:[#allocation5 + $0x834] sm:$0xff]
        %v621 = vld [vmem:[#allocation5 + $0x83c] sm:$0xff]
        %v622 = vld [vmem:[#allocation5 + $0x844] sm:$0xf]
        %v623 = vld [vmem:[#allocation5 + $0x848] sm:$0xff]
        %v624 = vld [vmem:[#allocation5 + $0x850] sm:$0xff]
        %v625 = vld [vmem:[#allocation5 + $0x858] sm:$0xf]
        %v626 = vld [vmem:[#allocation5 + $0x85c] sm:$0xff]
        %v627 = vld [vmem:[#allocation5 + $0x864] sm:$0xff]
        %v628 = vld [vmem:[#allocation5 + $0x86c] sm:$0xf]
        %v629 = vld [vmem:[#allocation5 + $0x870] sm:$0xff]
        %v630 = vld [vmem:[#allocation5 + $0x878] sm:$0xff]
        %v631 = vld [vmem:[#allocation5 + $0x880] sm:$0xf]
        %v632 = vld [vmem:[#allocation5 + $0x884] sm:$0xff]
        %v633 = vld [vmem:[#allocation5 + $0x88c] sm:$0xff]
        %v634 = vld [vmem:[#allocation5 + $0x894] sm:$0xf]
        %v635 = vld [vmem:[#allocation5 + $0x898] sm:$0xff]
        %v636 = vld [vmem:[#allocation5 + $0x8a0] sm:$0xff]
        %v637 = vld [vmem:[#allocation5 + $0x8a8] sm:$0xf]
        %v638 = vld [vmem:[#allocation5 + $0x8ac] sm:$0xff]
        %v639 = vld [vmem:[#allocation5 + $0x8b4] sm:$0xff]
        %v640 = vld [vmem:[#allocation5 + $0x8bc] sm:$0xf]
        %v641 = vld [vmem:[#allocation5 + $0x8c0] sm:$0xff]
        %v642 = vld [vmem:[#allocation5 + $0x8c8] sm:$0xff]
        %v643 = vld [vmem:[#allocation5 + $0x8d0] sm:$0xf]
        %v644 = vld [vmem:[#allocation5 + $0x8d4] sm:$0xff]
        %v645 = vld [vmem:[#allocation5 + $0x8dc] sm:$0xff]
        %v646 = vld [vmem:[#allocation5 + $0x8e4] sm:$0xf]
        %v647 = vld [vmem:[#allocation5 + $0x8e8] sm:$0xff]
        %v648 = vld [vmem:[#allocation5 + $0x8f0] sm:$0xff]
        %v649 = vld [vmem:[#allocation5 + $0x8f8] sm:$0xf]
        %v650 = vld [vmem:[#allocation5 + $0x8fc] sm:$0xff]
        %v651 = vld [vmem:[#allocation5 + $0x904] sm:$0xff]
        %v652 = vld [vmem:[#allocation5 + $0x90c] sm:$0xf]
        %v653 = vld [vmem:[#allocation5 + $0x910] sm:$0xff]
        %v654 = vld [vmem:[#allocation5 + $0x918] sm:$0xff]
        %v655 = vld [vmem:[#allocation5 + $0x920] sm:$0xf]
        %v656 = vld [vmem:[#allocation5 + $0x924] sm:$0xff]
        %v657 = vld [vmem:[#allocation5 + $0x92c] sm:$0xff]
        %v658 = vld [vmem:[#allocation5 + $0x934] sm:$0xf]
        %v659 = vld [vmem:[#allocation5 + $0x938] sm:$0xff]
        %v660 = vld [vmem:[#allocation5 + $0x940] sm:$0xff]
        %v661 = vld [vmem:[#allocation5 + $0x948] sm:$0xf]
        %v662 = vld [vmem:[#allocation5 + $0x94c] sm:$0xff]
        %v663 = vld [vmem:[#allocation5 + $0x954] sm:$0xff]
        %v664 = vld [vmem:[#allocation5 + $0x95c] sm:$0xf]
        %v665 = vld [vmem:[#allocation5 + $0x960] sm:$0xff]
        %v666 = vld [vmem:[#allocation5 + $0x968] sm:$0xff]
        %v667 = vld [vmem:[#allocation5 + $0x970] sm:$0xf]
        %v668 = vld [vmem:[#allocation5 + $0x974] sm:$0xff]
        %v669 = vld [vmem:[#allocation5 + $0x97c] sm:$0xff]
        %v670 = vld [vmem:[#allocation5 + $0x984] sm:$0xf]
        %v671 = vld [vmem:[#allocation5 + $0x988] sm:$0xff]
        %v672 = vld [vmem:[#allocation5 + $0x990] sm:$0xff]
        %v673 = vld [vmem:[#allocation5 + $0x998] sm:$0xf]
        %v674 = vld [vmem:[#allocation5 + $0x99c] sm:$0xff]
        %v675 = vld [vmem:[#allocation5 + $0x9a4] sm:$0xff]
        %v676 = vld [vmem:[#allocation5 + $0x9ac] sm:$0xf]
        %v677 = vld [vmem:[#allocation5 + $0x9b0] sm:$0xff]
        %v678 = vld [vmem:[#allocation5 + $0x9b8] sm:$0xff]
        %v679 = vld [vmem:[#allocation5 + $0x9c0] sm:$0xf]
        %v680 = vld [vmem:[#allocation5 + $0x9c4] sm:$0xff]
        %v681 = vld [vmem:[#allocation5 + $0x9cc] sm:$0xff]
        %v682 = vld [vmem:[#allocation5 + $0x9d4] sm:$0xf]
        %v683 = vld [vmem:[#allocation5 + $0x9d8] sm:$0xff]
        %v684 = vld [vmem:[#allocation5 + $0x9e0] sm:$0xff]
        %v685 = vld [vmem:[#allocation5 + $0x9e8] sm:$0xf]
        %v686 = vld [vmem:[#allocation5 + $0x9ec] sm:$0xff]
        %v687 = vld [vmem:[#allocation5 + $0x9f4] sm:$0xff]
        %v688 = vld [vmem:[#allocation5 + $0x9fc] sm:$0xf]
        %v697 = vunpack.c.l.b16 %v297
        %v698 = vunpack.c.h.b16 %v297
        %v699 = vunpack.c.l.b16 %v298
        %v700 = vunpack.c.h.b16 %v298
        %v701 = vunpack.c.l.b16 %v299
        %v702 = vunpack.c.h.b16 %v299
        %v703 = vunpack.c.l.b16 %v300
        %v704 = vunpack.c.h.b16 %v300
        %v705 = vunpack.c.l.b16 %v301
        %v706 = vunpack.c.h.b16 %v301
        %v707 = vunpack.c.l.b16 %v302
        %v708 = vunpack.c.h.b16 %v302
        %v709 = vunpack.c.l.b16 %v303
        %v710 = vunpack.c.h.b16 %v303
        %v711 = vunpack.c.l.b16 %v304
        %v712 = vunpack.c.h.b16 %v304
        %v713 = vpack.c.b16 %v705, %v697
        %v714 = vpack.c.b16 %v706, %v698
        %v715 = vpack.c.b16 %v707, %v699
        %v716 = vpack.c.b16 %v708, %v700
        %v717 = vpack.c.b16 %v709, %v701
        %v718 = vpack.c.b16 %v710, %v702
        %v719 = vpack.c.b16 %v711, %v703
        %v720 = vpack.c.b16 %v712, %v704
        %v1113 = vunpack.c.l.b16 %v305
        %v1114 = vunpack.c.h.b16 %v305
        %v1115 = vunpack.c.l.b16 %v306
        %v1116 = vunpack.c.h.b16 %v306
        %v1117 = vunpack.c.l.b16 %v307
        %v1118 = vunpack.c.l.b16 %v308
        %v1119 = vunpack.c.h.b16 %v308
        %v1120 = vunpack.c.l.b16 %v309
        %v1121 = vunpack.c.h.b16 %v309
        %v1122 = vunpack.c.l.b16 %v310
        %v1123 = vunpack.c.l.b16 %v311
        %v1124 = vunpack.c.h.b16 %v311
        %v1125 = vunpack.c.l.b16 %v312
        %v1126 = vunpack.c.h.b16 %v312
        %v1127 = vunpack.c.l.b16 %v313
        %v1128 = vunpack.c.l.b16 %v314
        %v1129 = vunpack.c.h.b16 %v314
        %v1130 = vunpack.c.l.b16 %v315
        %v1131 = vunpack.c.h.b16 %v315
        %v1132 = vunpack.c.l.b16 %v316
        %v1133 = vunpack.c.l.b16 %v317
        %v1134 = vunpack.c.h.b16 %v317
        %v1135 = vunpack.c.l.b16 %v318
        %v1136 = vunpack.c.h.b16 %v318
        %v1137 = vunpack.c.l.b16 %v319
        %v1138 = vunpack.c.l.b16 %v320
        %v1139 = vunpack.c.h.b16 %v320
        %v1140 = vunpack.c.l.b16 %v321
        %v1141 = vunpack.c.h.b16 %v321
        %v1142 = vunpack.c.l.b16 %v322
        %v1143 = vunpack.c.l.b16 %v323
        %v1144 = vunpack.c.h.b16 %v323
        %v1145 = vunpack.c.l.b16 %v324
        %v1146 = vunpack.c.h.b16 %v324
        %v1147 = vunpack.c.l.b16 %v325
        %v1148 = vunpack.c.l.b16 %v326
        %v1149 = vunpack.c.h.b16 %v326
        %v1150 = vunpack.c.l.b16 %v327
        %v1151 = vunpack.c.h.b16 %v327
        %v1152 = vunpack.c.l.b16 %v328
        %v1153 = vunpack.c.l.b16 %v329
        %v1154 = vunpack.c.h.b16 %v329
        %v1155 = vunpack.c.l.b16 %v330
        %v1156 = vunpack.c.h.b16 %v330
        %v1157 = vunpack.c.l.b16 %v331
        %v1158 = vunpack.c.l.b16 %v332
        %v1159 = vunpack.c.h.b16 %v332
        %v1160 = vunpack.c.l.b16 %v333
        %v1161 = vunpack.c.h.b16 %v333
        %v1162 = vunpack.c.l.b16 %v334
        %v1163 = vunpack.c.l.b16 %v335
        %v1164 = vunpack.c.h.b16 %v335
        %v1165 = vunpack.c.l.b16 %v336
        %v1166 = vunpack.c.h.b16 %v336
        %v1167 = vunpack.c.l.b16 %v337
        %v1168 = vunpack.c.l.b16 %v338
        %v1169 = vunpack.c.h.b16 %v338
        %v1170 = vunpack.c.l.b16 %v339
        %v1171 = vunpack.c.h.b16 %v339
        %v1172 = vunpack.c.l.b16 %v340
        %v1173 = vunpack.c.l.b16 %v341
        %v1174 = vunpack.c.h.b16 %v341
        %v1175 = vunpack.c.l.b16 %v342
        %v1176 = vunpack.c.h.b16 %v342
        %v1177 = vunpack.c.l.b16 %v343
        %v1178 = vunpack.c.l.b16 %v344
        %v1179 = vunpack.c.h.b16 %v344
        %v1180 = vunpack.c.l.b16 %v345
        %v1181 = vunpack.c.h.b16 %v345
        %v1182 = vunpack.c.l.b16 %v346
        %v1183 = vunpack.c.l.b16 %v347
        %v1184 = vunpack.c.h.b16 %v347
        %v1185 = vunpack.c.l.b16 %v348
        %v1186 = vunpack.c.h.b16 %v348
        %v1187 = vunpack.c.l.b16 %v349
        %v1188 = vunpack.c.l.b16 %v350
        %v1189 = vunpack.c.h.b16 %v350
        %v1190 = vunpack.c.l.b16 %v351
        %v1191 = vunpack.c.h.b16 %v351
        %v1192 = vunpack.c.l.b16 %v352
        %v1193 = vunpack.c.l.b16 %v353
        %v1194 = vunpack.c.h.b16 %v353
        %v1195 = vunpack.c.l.b16 %v354
        %v1196 = vunpack.c.h.b16 %v354
        %v1197 = vunpack.c.l.b16 %v355
        %v1198 = vunpack.c.l.b16 %v356
        %v1199 = vunpack.c.h.b16 %v356
        %v1200 = vunpack.c.l.b16 %v357
        %v1201 = vunpack.c.h.b16 %v357
        %v1202 = vunpack.c.l.b16 %v358
        %v1203 = vunpack.c.l.b16 %v359
        %v1204 = vunpack.c.h.b16 %v359
        %v1205 = vunpack.c.l.b16 %v360
        %v1206 = vunpack.c.h.b16 %v360
        %v1207 = vunpack.c.l.b16 %v361
        %v1208 = vunpack.c.l.b16 %v362
        %v1209 = vunpack.c.h.b16 %v362
        %v1210 = vunpack.c.l.b16 %v363
        %v1211 = vunpack.c.h.b16 %v363
        %v1212 = vunpack.c.l.b16 %v364
        %v1213 = vunpack.c.l.b16 %v365
        %v1214 = vunpack.c.h.b16 %v365
        %v1215 = vunpack.c.l.b16 %v366
        %v1216 = vunpack.c.h.b16 %v366
        %v1217 = vunpack.c.l.b16 %v367
        %v1218 = vunpack.c.l.b16 %v368
        %v1219 = vunpack.c.h.b16 %v368
        %v1220 = vunpack.c.l.b16 %v369
        %v1221 = vunpack.c.h.b16 %v369
        %v1222 = vunpack.c.l.b16 %v370
        %v1223 = vunpack.c.l.b16 %v371
        %v1224 = vunpack.c.h.b16 %v371
        %v1225 = vunpack.c.l.b16 %v372
        %v1226 = vunpack.c.h.b16 %v372
        %v1227 = vunpack.c.l.b16 %v373
        %v1228 = vunpack.c.l.b16 %v374
        %v1229 = vunpack.c.h.b16 %v374
        %v1230 = vunpack.c.l.b16 %v375
        %v1231 = vunpack.c.h.b16 %v375
        %v1232 = vunpack.c.l.b16 %v376
        %v1233 = vunpack.c.l.b16 %v377
        %v1234 = vunpack.c.h.b16 %v377
        %v1235 = vunpack.c.l.b16 %v378
        %v1236 = vunpack.c.h.b16 %v378
        %v1237 = vunpack.c.l.b16 %v379
        %v1238 = vunpack.c.l.b16 %v380
        %v1239 = vunpack.c.h.b16 %v380
        %v1240 = vunpack.c.l.b16 %v381
        %v1241 = vunpack.c.h.b16 %v381
        %v1242 = vunpack.c.l.b16 %v382
        %v1243 = vunpack.c.l.b16 %v383
        %v1244 = vunpack.c.h.b16 %v383
        %v1245 = vunpack.c.l.b16 %v384
        %v1246 = vunpack.c.h.b16 %v384
        %v1247 = vunpack.c.l.b16 %v385
        %v1248 = vunpack.c.l.b16 %v386
        %v1249 = vunpack.c.h.b16 %v386
        %v1250 = vunpack.c.l.b16 %v387
        %v1251 = vunpack.c.h.b16 %v387
        %v1252 = vunpack.c.l.b16 %v388
        %v1253 = vunpack.c.l.b16 %v389
        %v1254 = vunpack.c.h.b16 %v389
        %v1255 = vunpack.c.l.b16 %v390
        %v1256 = vunpack.c.h.b16 %v390
        %v1257 = vunpack.c.l.b16 %v391
        %v1258 = vunpack.c.l.b16 %v392
        %v1259 = vunpack.c.h.b16 %v392
        %v1260 = vunpack.c.l.b16 %v393
        %v1261 = vunpack.c.h.b16 %v393
        %v1262 = vunpack.c.l.b16 %v394
        %v1263 = vunpack.c.l.b16 %v395
        %v1264 = vunpack.c.h.b16 %v395
        %v1265 = vunpack.c.l.b16 %v396
        %v1266 = vunpack.c.h.b16 %v396
        %v1267 = vunpack.c.l.b16 %v397
        %v1268 = vunpack.c.l.b16 %v398
        %v1269 = vunpack.c.h.b16 %v398
        %v1270 = vunpack.c.l.b16 %v399
        %v1271 = vunpack.c.h.b16 %v399
        %v1272 = vunpack.c.l.b16 %v400
        %v1273 = vunpack.c.l.b16 %v401
        %v1274 = vunpack.c.h.b16 %v401
        %v1275 = vunpack.c.l.b16 %v402
        %v1276 = vunpack.c.h.b16 %v402
        %v1277 = vunpack.c.l.b16 %v403
        %v1278 = vunpack.c.l.b16 %v404
        %v1279 = vunpack.c.h.b16 %v404
        %v1280 = vunpack.c.l.b16 %v405
        %v1281 = vunpack.c.h.b16 %v405
        %v1282 = vunpack.c.l.b16 %v406
        %v1283 = vunpack.c.l.b16 %v407
        %v1284 = vunpack.c.h.b16 %v407
        %v1285 = vunpack.c.l.b16 %v408
        %v1286 = vunpack.c.h.b16 %v408
        %v1287 = vunpack.c.l.b16 %v409
        %v1288 = vunpack.c.l.b16 %v410
        %v1289 = vunpack.c.h.b16 %v410
        %v1290 = vunpack.c.l.b16 %v411
        %v1291 = vunpack.c.h.b16 %v411
        %v1292 = vunpack.c.l.b16 %v412
        %v1293 = vunpack.c.l.b16 %v413
        %v1294 = vunpack.c.h.b16 %v413
        %v1295 = vunpack.c.l.b16 %v414
        %v1296 = vunpack.c.h.b16 %v414
        %v1297 = vunpack.c.l.b16 %v415
        %v1298 = vunpack.c.l.b16 %v416
        %v1299 = vunpack.c.h.b16 %v416
        %v1300 = vunpack.c.l.b16 %v417
        %v1301 = vunpack.c.h.b16 %v417
        %v1302 = vunpack.c.l.b16 %v418
        %v1303 = vunpack.c.l.b16 %v419
        %v1304 = vunpack.c.h.b16 %v419
        %v1305 = vunpack.c.l.b16 %v420
        %v1306 = vunpack.c.h.b16 %v420
        %v1307 = vunpack.c.l.b16 %v421
        %v1308 = vunpack.c.l.b16 %v422
        %v1309 = vunpack.c.h.b16 %v422
        %v1310 = vunpack.c.l.b16 %v423
        %v1311 = vunpack.c.h.b16 %v423
        %v1312 = vunpack.c.l.b16 %v424
        %v1313 = vunpack.c.l.b16 %v425
        %v1314 = vunpack.c.h.b16 %v425
        %v1315 = vunpack.c.l.b16 %v426
        %v1316 = vunpack.c.h.b16 %v426
        %v1317 = vunpack.c.l.b16 %v427
        %v1318 = vunpack.c.l.b16 %v428
        %v1319 = vunpack.c.h.b16 %v428
        %v1320 = vunpack.c.l.b16 %v429
        %v1321 = vunpack.c.h.b16 %v429
        %v1322 = vunpack.c.l.b16 %v430
        %v1323 = vunpack.c.l.b16 %v431
        %v1324 = vunpack.c.h.b16 %v431
        %v1325 = vunpack.c.l.b16 %v432
        %v1326 = vunpack.c.h.b16 %v432
        %v1327 = vunpack.c.l.b16 %v433
        %v1328 = vunpack.c.l.b16 %v434
        %v1329 = vunpack.c.h.b16 %v434
        %v1330 = vunpack.c.l.b16 %v435
        %v1331 = vunpack.c.h.b16 %v435
        %v1332 = vunpack.c.l.b16 %v436
        %v1333 = vunpack.c.l.b16 %v437
        %v1334 = vunpack.c.h.b16 %v437
        %v1335 = vunpack.c.l.b16 %v438
        %v1336 = vunpack.c.h.b16 %v438
        %v1337 = vunpack.c.l.b16 %v439
        %v1338 = vunpack.c.l.b16 %v440
        %v1339 = vunpack.c.h.b16 %v440
        %v1340 = vunpack.c.l.b16 %v441
        %v1341 = vunpack.c.h.b16 %v441
        %v1342 = vunpack.c.l.b16 %v442
        %v1343 = vunpack.c.l.b16 %v443
        %v1344 = vunpack.c.h.b16 %v443
        %v1345 = vunpack.c.l.b16 %v444
        %v1346 = vunpack.c.h.b16 %v444
        %v1347 = vunpack.c.l.b16 %v445
        %v1348 = vunpack.c.l.b16 %v446
        %v1349 = vunpack.c.h.b16 %v446
        %v1350 = vunpack.c.l.b16 %v447
        %v1351 = vunpack.c.h.b16 %v447
        %v1352 = vunpack.c.l.b16 %v448
        %v1353 = vunpack.c.l.b16 %v449
        %v1354 = vunpack.c.h.b16 %v449
        %v1355 = vunpack.c.l.b16 %v450
        %v1356 = vunpack.c.h.b16 %v450
        %v1357 = vunpack.c.l.b16 %v451
        %v1358 = vunpack.c.l.b16 %v452
        %v1359 = vunpack.c.h.b16 %v452
        %v1360 = vunpack.c.l.b16 %v453
        %v1361 = vunpack.c.h.b16 %v453
        %v1362 = vunpack.c.l.b16 %v454
        %v1363 = vunpack.c.l.b16 %v455
        %v1364 = vunpack.c.h.b16 %v455
        %v1365 = vunpack.c.l.b16 %v456
        %v1366 = vunpack.c.h.b16 %v456
        %v1367 = vunpack.c.l.b16 %v457
        %v1368 = vunpack.c.l.b16 %v458
        %v1369 = vunpack.c.h.b16 %v458
        %v1370 = vunpack.c.l.b16 %v459
        %v1371 = vunpack.c.h.b16 %v459
        %v1372 = vunpack.c.l.b16 %v460
        %v1373 = vunpack.c.l.b16 %v461
        %v1374 = vunpack.c.h.b16 %v461
        %v1375 = vunpack.c.l.b16 %v462
        %v1376 = vunpack.c.h.b16 %v462
        %v1377 = vunpack.c.l.b16 %v463
        %v1378 = vunpack.c.l.b16 %v464
        %v1379 = vunpack.c.h.b16 %v464
        %v1380 = vunpack.c.l.b16 %v465
        %v1381 = vunpack.c.h.b16 %v465
        %v1382 = vunpack.c.l.b16 %v466
        %v1383 = vunpack.c.l.b16 %v467
        %v1384 = vunpack.c.h.b16 %v467
        %v1385 = vunpack.c.l.b16 %v468
        %v1386 = vunpack.c.h.b16 %v468
        %v1387 = vunpack.c.l.b16 %v469
        %v1388 = vunpack.c.l.b16 %v470
        %v1389 = vunpack.c.h.b16 %v470
        %v1390 = vunpack.c.l.b16 %v471
        %v1391 = vunpack.c.h.b16 %v471
        %v1392 = vunpack.c.l.b16 %v472
        %v1393 = vunpack.c.l.b16 %v473
        %v1394 = vunpack.c.h.b16 %v473
        %v1395 = vunpack.c.l.b16 %v474
        %v1396 = vunpack.c.h.b16 %v474
        %v1397 = vunpack.c.l.b16 %v475
        %v1398 = vunpack.c.l.b16 %v476
        %v1399 = vunpack.c.h.b16 %v476
        %v1400 = vunpack.c.l.b16 %v477
        %v1401 = vunpack.c.h.b16 %v477
        %v1402 = vunpack.c.l.b16 %v478
        %v1403 = vunpack.c.l.b16 %v479
        %v1404 = vunpack.c.h.b16 %v479
        %v1405 = vunpack.c.l.b16 %v480
        %v1406 = vunpack.c.h.b16 %v480
        %v1407 = vunpack.c.l.b16 %v481
        %v1408 = vunpack.c.l.b16 %v482
        %v1409 = vunpack.c.h.b16 %v482
        %v1410 = vunpack.c.l.b16 %v483
        %v1411 = vunpack.c.h.b16 %v483
        %v1412 = vunpack.c.l.b16 %v484
        %v1413 = vunpack.c.l.b16 %v485
        %v1414 = vunpack.c.h.b16 %v485
        %v1415 = vunpack.c.l.b16 %v486
        %v1416 = vunpack.c.h.b16 %v486
        %v1417 = vunpack.c.l.b16 %v487
        %v1418 = vunpack.c.l.b16 %v488
        %v1419 = vunpack.c.h.b16 %v488
        %v1420 = vunpack.c.l.b16 %v489
        %v1421 = vunpack.c.h.b16 %v489
        %v1422 = vunpack.c.l.b16 %v490
        %v1423 = vunpack.c.l.b16 %v491
        %v1424 = vunpack.c.h.b16 %v491
        %v1425 = vunpack.c.l.b16 %v492
        %v1426 = vunpack.c.h.b16 %v492
        %v1427 = vunpack.c.l.b16 %v493
        %v1428 = vunpack.c.l.b16 %v494
        %v1429 = vunpack.c.h.b16 %v494
        %v1430 = vunpack.c.l.b16 %v495
        %v1431 = vunpack.c.h.b16 %v495
        %v1432 = vunpack.c.l.b16 %v496
        %v1433 = vunpack.c.l.b16 %v497
        %v1434 = vunpack.c.h.b16 %v497
        %v1435 = vunpack.c.l.b16 %v498
        %v1436 = vunpack.c.h.b16 %v498
        %v1437 = vunpack.c.l.b16 %v499
        %v1438 = vunpack.c.l.b16 %v500
        %v1439 = vunpack.c.h.b16 %v500
        %v1440 = vunpack.c.l.b16 %v501
        %v1441 = vunpack.c.h.b16 %v501
        %v1442 = vunpack.c.l.b16 %v502
        %v1443 = vunpack.c.l.b16 %v503
        %v1444 = vunpack.c.h.b16 %v503
        %v1445 = vunpack.c.l.b16 %v504
        %v1446 = vunpack.c.h.b16 %v504
        %v1447 = vunpack.c.l.b16 %v505
        %v1448 = vunpack.c.l.b16 %v506
        %v1449 = vunpack.c.h.b16 %v506
        %v1450 = vunpack.c.l.b16 %v507
        %v1451 = vunpack.c.h.b16 %v507
        %v1452 = vunpack.c.l.b16 %v508
        %v1453 = vunpack.c.l.b16 %v509
        %v1454 = vunpack.c.h.b16 %v509
        %v1455 = vunpack.c.l.b16 %v510
        %v1456 = vunpack.c.h.b16 %v510
        %v1457 = vunpack.c.l.b16 %v511
        %v1458 = vunpack.c.l.b16 %v512
        %v1459 = vunpack.c.h.b16 %v512
        %v1460 = vunpack.c.l.b16 %v513
        %v1461 = vunpack.c.h.b16 %v513
        %v1462 = vunpack.c.l.b16 %v514
        %v1463 = vunpack.c.l.b16 %v515
        %v1464 = vunpack.c.h.b16 %v515
        %v1465 = vunpack.c.l.b16 %v516
        %v1466 = vunpack.c.h.b16 %v516
        %v1467 = vunpack.c.l.b16 %v517
        %v1468 = vunpack.c.l.b16 %v518
        %v1469 = vunpack.c.h.b16 %v518
        %v1470 = vunpack.c.l.b16 %v519
        %v1471 = vunpack.c.h.b16 %v519
        %v1472 = vunpack.c.l.b16 %v520
        %v1473 = vunpack.c.l.b16 %v521
        %v1474 = vunpack.c.h.b16 %v521
        %v1475 = vunpack.c.l.b16 %v522
        %v1476 = vunpack.c.h.b16 %v522
        %v1477 = vunpack.c.l.b16 %v523
        %v1478 = vunpack.c.l.b16 %v524
        %v1479 = vunpack.c.h.b16 %v524
        %v1480 = vunpack.c.l.b16 %v525
        %v1481 = vunpack.c.h.b16 %v525
        %v1482 = vunpack.c.l.b16 %v526
        %v1483 = vunpack.c.l.b16 %v527
        %v1484 = vunpack.c.h.b16 %v527
        %v1485 = vunpack.c.l.b16 %v528
        %v1486 = vunpack.c.h.b16 %v528
        %v1487 = vunpack.c.l.b16 %v529
        %v1488 = vunpack.c.l.b16 %v530
        %v1489 = vunpack.c.h.b16 %v530
        %v1490 = vunpack.c.l.b16 %v531
        %v1491 = vunpack.c.h.b16 %v531
        %v1492 = vunpack.c.l.b16 %v532
        %v1493 = vunpack.c.l.b16 %v533
        %v1494 = vunpack.c.h.b16 %v533
        %v1495 = vunpack.c.l.b16 %v534
        %v1496 = vunpack.c.h.b16 %v534
        %v1497 = vunpack.c.l.b16 %v535
        %v1498 = vunpack.c.l.b16 %v536
        %v1499 = vunpack.c.h.b16 %v536
        %v1500 = vunpack.c.l.b16 %v537
        %v1501 = vunpack.c.h.b16 %v537
        %v1502 = vunpack.c.l.b16 %v538
        %v1503 = vunpack.c.l.b16 %v539
        %v1504 = vunpack.c.h.b16 %v539
        %v1505 = vunpack.c.l.b16 %v540
        %v1506 = vunpack.c.h.b16 %v540
        %v1507 = vunpack.c.l.b16 %v541
        %v1508 = vunpack.c.l.b16 %v542
        %v1509 = vunpack.c.h.b16 %v542
        %v1510 = vunpack.c.l.b16 %v543
        %v1511 = vunpack.c.h.b16 %v543
        %v1512 = vunpack.c.l.b16 %v544
        %v1513 = vunpack.c.l.b16 %v545
        %v1514 = vunpack.c.h.b16 %v545
        %v1515 = vunpack.c.l.b16 %v546
        %v1516 = vunpack.c.h.b16 %v546
        %v1517 = vunpack.c.l.b16 %v547
        %v1518 = vunpack.c.l.b16 %v548
        %v1519 = vunpack.c.h.b16 %v548
        %v1520 = vunpack.c.l.b16 %v549
        %v1521 = vunpack.c.h.b16 %v549
        %v1522 = vunpack.c.l.b16 %v550
        %v1523 = vunpack.c.l.b16 %v551
        %v1524 = vunpack.c.h.b16 %v551
        %v1525 = vunpack.c.l.b16 %v552
        %v1526 = vunpack.c.h.b16 %v552
        %v1527 = vunpack.c.l.b16 %v553
        %v1528 = vunpack.c.l.b16 %v554
        %v1529 = vunpack.c.h.b16 %v554
        %v1530 = vunpack.c.l.b16 %v555
        %v1531 = vunpack.c.h.b16 %v555
        %v1532 = vunpack.c.l.b16 %v556
        %v1533 = vunpack.c.l.b16 %v557
        %v1534 = vunpack.c.h.b16 %v557
        %v1535 = vunpack.c.l.b16 %v558
        %v1536 = vunpack.c.h.b16 %v558
        %v1537 = vunpack.c.l.b16 %v559
        %v1538 = vunpack.c.l.b16 %v560
        %v1539 = vunpack.c.h.b16 %v560
        %v1540 = vunpack.c.l.b16 %v561
        %v1541 = vunpack.c.h.b16 %v561
        %v1542 = vunpack.c.l.b16 %v562
        %v1543 = vunpack.c.l.b16 %v563
        %v1544 = vunpack.c.h.b16 %v563
        %v1545 = vunpack.c.l.b16 %v564
        %v1546 = vunpack.c.h.b16 %v564
        %v1547 = vunpack.c.l.b16 %v565
        %v1548 = vunpack.c.l.b16 %v566
        %v1549 = vunpack.c.h.b16 %v566
        %v1550 = vunpack.c.l.b16 %v567
        %v1551 = vunpack.c.h.b16 %v567
        %v1552 = vunpack.c.l.b16 %v568
        %v1553 = vunpack.c.l.b16 %v569
        %v1554 = vunpack.c.h.b16 %v569
        %v1555 = vunpack.c.l.b16 %v570
        %v1556 = vunpack.c.h.b16 %v570
        %v1557 = vunpack.c.l.b16 %v571
        %v1558 = vunpack.c.l.b16 %v572
        %v1559 = vunpack.c.h.b16 %v572
        %v1560 = vunpack.c.l.b16 %v573
        %v1561 = vunpack.c.h.b16 %v573
        %v1562 = vunpack.c.l.b16 %v574
        %v1563 = vunpack.c.l.b16 %v575
        %v1564 = vunpack.c.h.b16 %v575
        %v1565 = vunpack.c.l.b16 %v576
        %v1566 = vunpack.c.h.b16 %v576
        %v1567 = vunpack.c.l.b16 %v577
        %v1568 = vunpack.c.l.b16 %v578
        %v1569 = vunpack.c.h.b16 %v578
        %v1570 = vunpack.c.l.b16 %v579
        %v1571 = vunpack.c.h.b16 %v579
        %v1572 = vunpack.c.l.b16 %v580
        %v1573 = vunpack.c.l.b16 %v581
        %v1574 = vunpack.c.h.b16 %v581
        %v1575 = vunpack.c.l.b16 %v582
        %v1576 = vunpack.c.h.b16 %v582
        %v1577 = vunpack.c.l.b16 %v583
        %v1578 = vunpack.c.l.b16 %v584
        %v1579 = vunpack.c.h.b16 %v584
        %v1580 = vunpack.c.l.b16 %v585
        %v1581 = vunpack.c.h.b16 %v585
        %v1582 = vunpack.c.l.b16 %v586
        %v1583 = vunpack.c.l.b16 %v587
        %v1584 = vunpack.c.h.b16 %v587
        %v1585 = vunpack.c.l.b16 %v588
        %v1586 = vunpack.c.h.b16 %v588
        %v1587 = vunpack.c.l.b16 %v589
        %v1588 = vunpack.c.l.b16 %v590
        %v1589 = vunpack.c.h.b16 %v590
        %v1590 = vunpack.c.l.b16 %v591
        %v1591 = vunpack.c.h.b16 %v591
        %v1592 = vunpack.c.l.b16 %v592
        %v1593 = vunpack.c.l.b16 %v593
        %v1594 = vunpack.c.h.b16 %v593
        %v1595 = vunpack.c.l.b16 %v594
        %v1596 = vunpack.c.h.b16 %v594
        %v1597 = vunpack.c.l.b16 %v595
        %v1598 = vunpack.c.l.b16 %v596
        %v1599 = vunpack.c.h.b16 %v596
        %v1600 = vunpack.c.l.b16 %v597
        %v1601 = vunpack.c.h.b16 %v597
        %v1602 = vunpack.c.l.b16 %v598
        %v1603 = vunpack.c.l.b16 %v599
        %v1604 = vunpack.c.h.b16 %v599
        %v1605 = vunpack.c.l.b16 %v600
        %v1606 = vunpack.c.h.b16 %v600
        %v1607 = vunpack.c.l.b16 %v601
        %v1608 = vunpack.c.l.b16 %v602
        %v1609 = vunpack.c.h.b16 %v602
        %v1610 = vunpack.c.l.b16 %v603
        %v1611 = vunpack.c.h.b16 %v603
        %v1612 = vunpack.c.l.b16 %v604
        %v1613 = vunpack.c.l.b16 %v605
        %v1614 = vunpack.c.h.b16 %v605
        %v1615 = vunpack.c.l.b16 %v606
        %v1616 = vunpack.c.h.b16 %v606
        %v1617 = vunpack.c.l.b16 %v607
        %v1618 = vunpack.c.l.b16 %v608
        %v1619 = vunpack.c.h.b16 %v608
        %v1620 = vunpack.c.l.b16 %v609
        %v1621 = vunpack.c.h.b16 %v609
        %v1622 = vunpack.c.l.b16 %v610
        %v1623 = vunpack.c.l.b16 %v611
        %v1624 = vunpack.c.h.b16 %v611
        %v1625 = vunpack.c.l.b16 %v612
        %v1626 = vunpack.c.h.b16 %v612
        %v1627 = vunpack.c.l.b16 %v613
        %v1628 = vunpack.c.l.b16 %v614
        %v1629 = vunpack.c.h.b16 %v614
        %v1630 = vunpack.c.l.b16 %v615
        %v1631 = vunpack.c.h.b16 %v615
        %v1632 = vunpack.c.l.b16 %v616
        %v1633 = vunpack.c.l.b16 %v617
        %v1634 = vunpack.c.h.b16 %v617
        %v1635 = vunpack.c.l.b16 %v618
        %v1636 = vunpack.c.h.b16 %v618
        %v1637 = vunpack.c.l.b16 %v619
        %v1638 = vunpack.c.l.b16 %v620
        %v1639 = vunpack.c.h.b16 %v620
        %v1640 = vunpack.c.l.b16 %v621
        %v1641 = vunpack.c.h.b16 %v621
        %v1642 = vunpack.c.l.b16 %v622
        %v1643 = vunpack.c.l.b16 %v623
        %v1644 = vunpack.c.h.b16 %v623
        %v1645 = vunpack.c.l.b16 %v624
        %v1646 = vunpack.c.h.b16 %v624
        %v1647 = vunpack.c.l.b16 %v625
        %v1648 = vunpack.c.l.b16 %v626
        %v1649 = vunpack.c.h.b16 %v626
        %v1650 = vunpack.c.l.b16 %v627
        %v1651 = vunpack.c.h.b16 %v627
        %v1652 = vunpack.c.l.b16 %v628
        %v1653 = vunpack.c.l.b16 %v629
        %v1654 = vunpack.c.h.b16 %v629
        %v1655 = vunpack.c.l.b16 %v630
        %v1656 = vunpack.c.h.b16 %v630
        %v1657 = vunpack.c.l.b16 %v631
        %v1658 = vunpack.c.l.b16 %v632
        %v1659 = vunpack.c.h.b16 %v632
        %v1660 = vunpack.c.l.b16 %v633
        %v1661 = vunpack.c.h.b16 %v633
        %v1662 = vunpack.c.l.b16 %v634
        %v1663 = vunpack.c.l.b16 %v635
        %v1664 = vunpack.c.h.b16 %v635
        %v1665 = vunpack.c.l.b16 %v636
        %v1666 = vunpack.c.h.b16 %v636
        %v1667 = vunpack.c.l.b16 %v637
        %v1668 = vunpack.c.l.b16 %v638
        %v1669 = vunpack.c.h.b16 %v638
        %v1670 = vunpack.c.l.b16 %v639
        %v1671 = vunpack.c.h.b16 %v639
        %v1672 = vunpack.c.l.b16 %v640
        %v1673 = vunpack.c.l.b16 %v641
        %v1674 = vunpack.c.h.b16 %v641
        %v1675 = vunpack.c.l.b16 %v642
        %v1676 = vunpack.c.h.b16 %v642
        %v1677 = vunpack.c.l.b16 %v643
        %v1678 = vunpack.c.l.b16 %v644
        %v1679 = vunpack.c.h.b16 %v644
        %v1680 = vunpack.c.l.b16 %v645
        %v1681 = vunpack.c.h.b16 %v645
        %v1682 = vunpack.c.l.b16 %v646
        %v1683 = vunpack.c.l.b16 %v647
        %v1684 = vunpack.c.h.b16 %v647
        %v1685 = vunpack.c.l.b16 %v648
        %v1686 = vunpack.c.h.b16 %v648
        %v1687 = vunpack.c.l.b16 %v649
        %v1688 = vunpack.c.l.b16 %v650
        %v1689 = vunpack.c.h.b16 %v650
        %v1690 = vunpack.c.l.b16 %v651
        %v1691 = vunpack.c.h.b16 %v651
        %v1692 = vunpack.c.l.b16 %v652
        %v1693 = vunpack.c.l.b16 %v653
        %v1694 = vunpack.c.h.b16 %v653
        %v1695 = vunpack.c.l.b16 %v654
        %v1696 = vunpack.c.h.b16 %v654
        %v1697 = vunpack.c.l.b16 %v655
        %v1698 = vunpack.c.l.b16 %v656
        %v1699 = vunpack.c.h.b16 %v656
        %v1700 = vunpack.c.l.b16 %v657
        %v1701 = vunpack.c.h.b16 %v657
        %v1702 = vunpack.c.l.b16 %v658
        %v1703 = vunpack.c.l.b16 %v659
        %v1704 = vunpack.c.h.b16 %v659
        %v1705 = vunpack.c.l.b16 %v660
        %v1706 = vunpack.c.h.b16 %v660
        %v1707 = vunpack.c.l.b16 %v661
        %v1708 = vunpack.c.l.b16 %v662
        %v1709 = vunpack.c.h.b16 %v662
        %v1710 = vunpack.c.l.b16 %v663
        %v1711 = vunpack.c.h.b16 %v663
        %v1712 = vunpack.c.l.b16 %v664
        %v1713 = vunpack.c.l.b16 %v665
        %v1714 = vunpack.c.h.b16 %v665
        %v1715 = vunpack.c.l.b16 %v666
        %v1716 = vunpack.c.h.b16 %v666
        %v1717 = vunpack.c.l.b16 %v667
        %v1718 = vunpack.c.l.b16 %v668
        %v1719 = vunpack.c.h.b16 %v668
        %v1720 = vunpack.c.l.b16 %v669
        %v1721 = vunpack.c.h.b16 %v669
        %v1722 = vunpack.c.l.b16 %v670
        %v1723 = vunpack.c.l.b16 %v671
        %v1724 = vunpack.c.h.b16 %v671
        %v1725 = vunpack.c.l.b16 %v672
        %v1726 = vunpack.c.h.b16 %v672
        %v1727 = vunpack.c.l.b16 %v673
        %v1728 = vunpack.c.l.b16 %v674
        %v1729 = vunpack.c.h.b16 %v674
        %v1730 = vunpack.c.l.b16 %v675
        %v1731 = vunpack.c.h.b16 %v675
        %v1732 = vunpack.c.l.b16 %v676
        %v1733 = vunpack.c.l.b16 %v677
        %v1734 = vunpack.c.h.b16 %v677
        %v1735 = vunpack.c.l.b16 %v678
        %v1736 = vunpack.c.h.b16 %v678
        %v1737 = vunpack.c.l.b16 %v679
        %v1738 = vunpack.c.l.b16 %v680
        %v1739 = vunpack.c.h.b16 %v680
        %v1740 = vunpack.c.l.b16 %v681
        %v1741 = vunpack.c.h.b16 %v681
        %v1742 = vunpack.c.l.b16 %v682
        %v1743 = vunpack.c.l.b16 %v683
        %v1744 = vunpack.c.h.b16 %v683
        %v1745 = vunpack.c.l.b16 %v684
        %v1746 = vunpack.c.h.b16 %v684
        %v1747 = vunpack.c.l.b16 %v685
        %v1748 = vunpack.c.l.b16 %v686
        %v1749 = vunpack.c.h.b16 %v686
        %v1750 = vunpack.c.l.b16 %v687
        %v1751 = vunpack.c.h.b16 %v687
        %v1752 = vunpack.c.l.b16 %v688
        %v1753 = vpack.c.b16 %v1118, %v1113
        %v1754 = vpack.c.b16 %v1119, %v1114
        %v1755 = vpack.c.b16 %v1120, %v1115
        %v1756 = vpack.c.b16 %v1121, %v1116
        %v1757 = vpack.c.b16 %v1122, %v1117
        %v1758 = vpack.c.b16 %v1128, %v1123
        %v1759 = vpack.c.b16 %v1129, %v1124
        %v1760 = vpack.c.b16 %v1130, %v1125
        %v1761 = vpack.c.b16 %v1131, %v1126
        %v1762 = vpack.c.b16 %v1132, %v1127
        %v1763 = vpack.c.b16 %v1138, %v1133
        %v1764 = vpack.c.b16 %v1139, %v1134
        %v1765 = vpack.c.b16 %v1140, %v1135
        %v1766 = vpack.c.b16 %v1141, %v1136
        %v1767 = vpack.c.b16 %v1142, %v1137
        %v1768 = vpack.c.b16 %v1148, %v1143
        %v1769 = vpack.c.b16 %v1149, %v1144
        %v1770 = vpack.c.b16 %v1150, %v1145
        %v1771 = vpack.c.b16 %v1151, %v1146
        %v1772 = vpack.c.b16 %v1152, %v1147
        %v1773 = vpack.c.b16 %v1158, %v1153
        %v1774 = vpack.c.b16 %v1159, %v1154
        %v1775 = vpack.c.b16 %v1160, %v1155
        %v1776 = vpack.c.b16 %v1161, %v1156
        %v1777 = vpack.c.b16 %v1162, %v1157
        %v1778 = vpack.c.b16 %v1168, %v1163
        %v1779 = vpack.c.b16 %v1169, %v1164
        %v1780 = vpack.c.b16 %v1170, %v1165
        %v1781 = vpack.c.b16 %v1171, %v1166
        %v1782 = vpack.c.b16 %v1172, %v1167
        %v1783 = vpack.c.b16 %v1178, %v1173
        %v1784 = vpack.c.b16 %v1179, %v1174
        %v1785 = vpack.c.b16 %v1180, %v1175
        %v1786 = vpack.c.b16 %v1181, %v1176
        %v1787 = vpack.c.b16 %v1182, %v1177
        %v1788 = vpack.c.b16 %v1188, %v1183
        %v1789 = vpack.c.b16 %v1189, %v1184
        %v1790 = vpack.c.b16 %v1190, %v1185
        %v1791 = vpack.c.b16 %v1191, %v1186
        %v1792 = vpack.c.b16 %v1192, %v1187
        %v1793 = vpack.c.b16 %v1198, %v1193
        %v1794 = vpack.c.b16 %v1199, %v1194
        %v1795 = vpack.c.b16 %v1200, %v1195
        %v1796 = vpack.c.b16 %v1201, %v1196
        %v1797 = vpack.c.b16 %v1202, %v1197
        %v1798 = vpack.c.b16 %v1208, %v1203
        %v1799 = vpack.c.b16 %v1209, %v1204
        %v1800 = vpack.c.b16 %v1210, %v1205
        %v1801 = vpack.c.b16 %v1211, %v1206
        %v1802 = vpack.c.b16 %v1212, %v1207
        %v1803 = vpack.c.b16 %v1218, %v1213
        %v1804 = vpack.c.b16 %v1219, %v1214
        %v1805 = vpack.c.b16 %v1220, %v1215
        %v1806 = vpack.c.b16 %v1221, %v1216
        %v1807 = vpack.c.b16 %v1222, %v1217
        %v1808 = vpack.c.b16 %v1228, %v1223
        %v1809 = vpack.c.b16 %v1229, %v1224
        %v1810 = vpack.c.b16 %v1230, %v1225
        %v1811 = vpack.c.b16 %v1231, %v1226
        %v1812 = vpack.c.b16 %v1232, %v1227
        %v1813 = vpack.c.b16 %v1238, %v1233
        %v1814 = vpack.c.b16 %v1239, %v1234
        %v1815 = vpack.c.b16 %v1240, %v1235
        %v1816 = vpack.c.b16 %v1241, %v1236
        %v1817 = vpack.c.b16 %v1242, %v1237
        %v1818 = vpack.c.b16 %v1248, %v1243
        %v1819 = vpack.c.b16 %v1249, %v1244
        %v1820 = vpack.c.b16 %v1250, %v1245
        %v1821 = vpack.c.b16 %v1251, %v1246
        %v1822 = vpack.c.b16 %v1252, %v1247
        %v1823 = vpack.c.b16 %v1258, %v1253
        %v1824 = vpack.c.b16 %v1259, %v1254
        %v1825 = vpack.c.b16 %v1260, %v1255
        %v1826 = vpack.c.b16 %v1261, %v1256
        %v1827 = vpack.c.b16 %v1262, %v1257
        %v1828 = vpack.c.b16 %v1268, %v1263
        %v1829 = vpack.c.b16 %v1269, %v1264
        %v1830 = vpack.c.b16 %v1270, %v1265
        %v1831 = vpack.c.b16 %v1271, %v1266
        %v1832 = vpack.c.b16 %v1272, %v1267
        %v1833 = vpack.c.b16 %v1278, %v1273
        %v1834 = vpack.c.b16 %v1279, %v1274
        %v1835 = vpack.c.b16 %v1280, %v1275
        %v1836 = vpack.c.b16 %v1281, %v1276
        %v1837 = vpack.c.b16 %v1282, %v1277
        %v1838 = vpack.c.b16 %v1288, %v1283
        %v1839 = vpack.c.b16 %v1289, %v1284
        %v1840 = vpack.c.b16 %v1290, %v1285
        %v1841 = vpack.c.b16 %v1291, %v1286
        %v1842 = vpack.c.b16 %v1292, %v1287
        %v1843 = vpack.c.b16 %v1298, %v1293
        %v1844 = vpack.c.b16 %v1299, %v1294
        %v1845 = vpack.c.b16 %v1300, %v1295
        %v1846 = vpack.c.b16 %v1301, %v1296
        %v1847 = vpack.c.b16 %v1302, %v1297
        %v1848 = vpack.c.b16 %v1308, %v1303
        %v1849 = vpack.c.b16 %v1309, %v1304
        %v1850 = vpack.c.b16 %v1310, %v1305
        %v1851 = vpack.c.b16 %v1311, %v1306
        %v1852 = vpack.c.b16 %v1312, %v1307
        %v1853 = vpack.c.b16 %v1318, %v1313
        %v1854 = vpack.c.b16 %v1319, %v1314
        %v1855 = vpack.c.b16 %v1320, %v1315
        %v1856 = vpack.c.b16 %v1321, %v1316
        %v1857 = vpack.c.b16 %v1322, %v1317
        %v1858 = vpack.c.b16 %v1328, %v1323
        %v1859 = vpack.c.b16 %v1329, %v1324
        %v1860 = vpack.c.b16 %v1330, %v1325
        %v1861 = vpack.c.b16 %v1331, %v1326
        %v1862 = vpack.c.b16 %v1332, %v1327
        %v1863 = vpack.c.b16 %v1338, %v1333
        %v1864 = vpack.c.b16 %v1339, %v1334
        %v1865 = vpack.c.b16 %v1340, %v1335
        %v1866 = vpack.c.b16 %v1341, %v1336
        %v1867 = vpack.c.b16 %v1342, %v1337
        %v1868 = vpack.c.b16 %v1348, %v1343
        %v1869 = vpack.c.b16 %v1349, %v1344
        %v1870 = vpack.c.b16 %v1350, %v1345
        %v1871 = vpack.c.b16 %v1351, %v1346
        %v1872 = vpack.c.b16 %v1352, %v1347
        %v1873 = vpack.c.b16 %v1358, %v1353
        %v1874 = vpack.c.b16 %v1359, %v1354
        %v1875 = vpack.c.b16 %v1360, %v1355
        %v1876 = vpack.c.b16 %v1361, %v1356
        %v1877 = vpack.c.b16 %v1362, %v1357
        %v1878 = vpack.c.b16 %v1368, %v1363
        %v1879 = vpack.c.b16 %v1369, %v1364
        %v1880 = vpack.c.b16 %v1370, %v1365
        %v1881 = vpack.c.b16 %v1371, %v1366
        %v1882 = vpack.c.b16 %v1372, %v1367
        %v1883 = vpack.c.b16 %v1378, %v1373
        %v1884 = vpack.c.b16 %v1379, %v1374
        %v1885 = vpack.c.b16 %v1380, %v1375
        %v1886 = vpack.c.b16 %v1381, %v1376
        %v1887 = vpack.c.b16 %v1382, %v1377
        %v1888 = vpack.c.b16 %v1388, %v1383
        %v1889 = vpack.c.b16 %v1389, %v1384
        %v1890 = vpack.c.b16 %v1390, %v1385
        %v1891 = vpack.c.b16 %v1391, %v1386
        %v1892 = vpack.c.b16 %v1392, %v1387
        %v1893 = vpack.c.b16 %v1398, %v1393
        %v1894 = vpack.c.b16 %v1399, %v1394
        %v1895 = vpack.c.b16 %v1400, %v1395
        %v1896 = vpack.c.b16 %v1401, %v1396
        %v1897 = vpack.c.b16 %v1402, %v1397
        %v1898 = vpack.c.b16 %v1408, %v1403
        %v1899 = vpack.c.b16 %v1409, %v1404
        %v1900 = vpack.c.b16 %v1410, %v1405
        %v1901 = vpack.c.b16 %v1411, %v1406
        %v1902 = vpack.c.b16 %v1412, %v1407
        %v1903 = vpack.c.b16 %v1418, %v1413
        %v1904 = vpack.c.b16 %v1419, %v1414
        %v1905 = vpack.c.b16 %v1420, %v1415
        %v1906 = vpack.c.b16 %v1421, %v1416
        %v1907 = vpack.c.b16 %v1422, %v1417
        %v1908 = vpack.c.b16 %v1428, %v1423
        %v1909 = vpack.c.b16 %v1429, %v1424
        %v1910 = vpack.c.b16 %v1430, %v1425
        %v1911 = vpack.c.b16 %v1431, %v1426
        %v1912 = vpack.c.b16 %v1432, %v1427
        %v1913 = vpack.c.b16 %v1438, %v1433
        %v1914 = vpack.c.b16 %v1439, %v1434
        %v1915 = vpack.c.b16 %v1440, %v1435
        %v1916 = vpack.c.b16 %v1441, %v1436
        %v1917 = vpack.c.b16 %v1442, %v1437
        %v1918 = vpack.c.b16 %v1448, %v1443
        %v1919 = vpack.c.b16 %v1449, %v1444
        %v1920 = vpack.c.b16 %v1450, %v1445
        %v1921 = vpack.c.b16 %v1451, %v1446
        %v1922 = vpack.c.b16 %v1452, %v1447
        %v1923 = vpack.c.b16 %v1458, %v1453
        %v1924 = vpack.c.b16 %v1459, %v1454
        %v1925 = vpack.c.b16 %v1460, %v1455
        %v1926 = vpack.c.b16 %v1461, %v1456
        %v1927 = vpack.c.b16 %v1462, %v1457
        %v1928 = vpack.c.b16 %v1468, %v1463
        %v1929 = vpack.c.b16 %v1469, %v1464
        %v1930 = vpack.c.b16 %v1470, %v1465
        %v1931 = vpack.c.b16 %v1471, %v1466
        %v1932 = vpack.c.b16 %v1472, %v1467
        %v1933 = vpack.c.b16 %v1478, %v1473
        %v1934 = vpack.c.b16 %v1479, %v1474
        %v1935 = vpack.c.b16 %v1480, %v1475
        %v1936 = vpack.c.b16 %v1481, %v1476
        %v1937 = vpack.c.b16 %v1482, %v1477
        %v1938 = vpack.c.b16 %v1488, %v1483
        %v1939 = vpack.c.b16 %v1489, %v1484
        %v1940 = vpack.c.b16 %v1490, %v1485
        %v1941 = vpack.c.b16 %v1491, %v1486
        %v1942 = vpack.c.b16 %v1492, %v1487
        %v1943 = vpack.c.b16 %v1498, %v1493
        %v1944 = vpack.c.b16 %v1499, %v1494
        %v1945 = vpack.c.b16 %v1500, %v1495
        %v1946 = vpack.c.b16 %v1501, %v1496
        %v1947 = vpack.c.b16 %v1502, %v1497
        %v1948 = vpack.c.b16 %v1508, %v1503
        %v1949 = vpack.c.b16 %v1509, %v1504
        %v1950 = vpack.c.b16 %v1510, %v1505
        %v1951 = vpack.c.b16 %v1511, %v1506
        %v1952 = vpack.c.b16 %v1512, %v1507
        %v1953 = vpack.c.b16 %v1518, %v1513
        %v1954 = vpack.c.b16 %v1519, %v1514
        %v1955 = vpack.c.b16 %v1520, %v1515
        %v1956 = vpack.c.b16 %v1521, %v1516
        %v1957 = vpack.c.b16 %v1522, %v1517
        %v1958 = vpack.c.b16 %v1528, %v1523
        %v1959 = vpack.c.b16 %v1529, %v1524
        %v1960 = vpack.c.b16 %v1530, %v1525
        %v1961 = vpack.c.b16 %v1531, %v1526
        %v1962 = vpack.c.b16 %v1532, %v1527
        %v1963 = vpack.c.b16 %v1538, %v1533
        %v1964 = vpack.c.b16 %v1539, %v1534
        %v1965 = vpack.c.b16 %v1540, %v1535
        %v1966 = vpack.c.b16 %v1541, %v1536
        %v1967 = vpack.c.b16 %v1542, %v1537
        %v1968 = vpack.c.b16 %v1548, %v1543
        %v1969 = vpack.c.b16 %v1549, %v1544
        %v1970 = vpack.c.b16 %v1550, %v1545
        %v1971 = vpack.c.b16 %v1551, %v1546
        %v1972 = vpack.c.b16 %v1552, %v1547
        %v1973 = vpack.c.b16 %v1558, %v1553
        %v1974 = vpack.c.b16 %v1559, %v1554
        %v1975 = vpack.c.b16 %v1560, %v1555
        %v1976 = vpack.c.b16 %v1561, %v1556
        %v1977 = vpack.c.b16 %v1562, %v1557
        %v1978 = vpack.c.b16 %v1568, %v1563
        %v1979 = vpack.c.b16 %v1569, %v1564
        %v1980 = vpack.c.b16 %v1570, %v1565
        %v1981 = vpack.c.b16 %v1571, %v1566
        %v1982 = vpack.c.b16 %v1572, %v1567
        %v1983 = vpack.c.b16 %v1578, %v1573
        %v1984 = vpack.c.b16 %v1579, %v1574
        %v1985 = vpack.c.b16 %v1580, %v1575
        %v1986 = vpack.c.b16 %v1581, %v1576
        %v1987 = vpack.c.b16 %v1582, %v1577
        %v1988 = vpack.c.b16 %v1588, %v1583
        %v1989 = vpack.c.b16 %v1589, %v1584
        %v1990 = vpack.c.b16 %v1590, %v1585
        %v1991 = vpack.c.b16 %v1591, %v1586
        %v1992 = vpack.c.b16 %v1592, %v1587
        %v1993 = vpack.c.b16 %v1598, %v1593
        %v1994 = vpack.c.b16 %v1599, %v1594
        %v1995 = vpack.c.b16 %v1600, %v1595
        %v1996 = vpack.c.b16 %v1601, %v1596
        %v1997 = vpack.c.b16 %v1602, %v1597
        %v1998 = vpack.c.b16 %v1608, %v1603
        %v1999 = vpack.c.b16 %v1609, %v1604
        %v2000 = vpack.c.b16 %v1610, %v1605
        %v2001 = vpack.c.b16 %v1611, %v1606
        %v2002 = vpack.c.b16 %v1612, %v1607
        %v2003 = vpack.c.b16 %v1618, %v1613
        %v2004 = vpack.c.b16 %v1619, %v1614
        %v2005 = vpack.c.b16 %v1620, %v1615
        %v2006 = vpack.c.b16 %v1621, %v1616
        %v2007 = vpack.c.b16 %v1622, %v1617
        %v2008 = vpack.c.b16 %v1628, %v1623
        %v2009 = vpack.c.b16 %v1629, %v1624
        %v2010 = vpack.c.b16 %v1630, %v1625
        %v2011 = vpack.c.b16 %v1631, %v1626
        %v2012 = vpack.c.b16 %v1632, %v1627
        %v2013 = vpack.c.b16 %v1638, %v1633
        %v2014 = vpack.c.b16 %v1639, %v1634
        %v2015 = vpack.c.b16 %v1640, %v1635
        %v2016 = vpack.c.b16 %v1641, %v1636
        %v2017 = vpack.c.b16 %v1642, %v1637
        %v2018 = vpack.c.b16 %v1648, %v1643
        %v2019 = vpack.c.b16 %v1649, %v1644
        %v2020 = vpack.c.b16 %v1650, %v1645
        %v2021 = vpack.c.b16 %v1651, %v1646
        %v2022 = vpack.c.b16 %v1652, %v1647
        %v2023 = vpack.c.b16 %v1658, %v1653
        %v2024 = vpack.c.b16 %v1659, %v1654
        %v2025 = vpack.c.b16 %v1660, %v1655
        %v2026 = vpack.c.b16 %v1661, %v1656
        %v2027 = vpack.c.b16 %v1662, %v1657
        %v2028 = vpack.c.b16 %v1668, %v1663
        %v2029 = vpack.c.b16 %v1669, %v1664
        %v2030 = vpack.c.b16 %v1670, %v1665
        %v2031 = vpack.c.b16 %v1671, %v1666
        %v2032 = vpack.c.b16 %v1672, %v1667
        %v2033 = vpack.c.b16 %v1678, %v1673
        %v2034 = vpack.c.b16 %v1679, %v1674
        %v2035 = vpack.c.b16 %v1680, %v1675
        %v2036 = vpack.c.b16 %v1681, %v1676
        %v2037 = vpack.c.b16 %v1682, %v1677
        %v2038 = vpack.c.b16 %v1688, %v1683
        %v2039 = vpack.c.b16 %v1689, %v1684
        %v2040 = vpack.c.b16 %v1690, %v1685
        %v2041 = vpack.c.b16 %v1691, %v1686
        %v2042 = vpack.c.b16 %v1692, %v1687
        %v2043 = vpack.c.b16 %v1698, %v1693
        %v2044 = vpack.c.b16 %v1699, %v1694
        %v2045 = vpack.c.b16 %v1700, %v1695
        %v2046 = vpack.c.b16 %v1701, %v1696
        %v2047 = vpack.c.b16 %v1702, %v1697
        %v2048 = vpack.c.b16 %v1708, %v1703
        %v2049 = vpack.c.b16 %v1709, %v1704
        %v2050 = vpack.c.b16 %v1710, %v1705
        %v2051 = vpack.c.b16 %v1711, %v1706
        %v2052 = vpack.c.b16 %v1712, %v1707
        %v2053 = vpack.c.b16 %v1718, %v1713
        %v2054 = vpack.c.b16 %v1719, %v1714
        %v2055 = vpack.c.b16 %v1720, %v1715
        %v2056 = vpack.c.b16 %v1721, %v1716
        %v2057 = vpack.c.b16 %v1722, %v1717
        %v2058 = vpack.c.b16 %v1728, %v1723
        %v2059 = vpack.c.b16 %v1729, %v1724
        %v2060 = vpack.c.b16 %v1730, %v1725
        %v2061 = vpack.c.b16 %v1731, %v1726
        %v2062 = vpack.c.b16 %v1732, %v1727
        %v2063 = vpack.c.b16 %v1738, %v1733
        %v2064 = vpack.c.b16 %v1739, %v1734
        %v2065 = vpack.c.b16 %v1740, %v1735
        %v2066 = vpack.c.b16 %v1741, %v1736
        %v2067 = vpack.c.b16 %v1742, %v1737
        %v2068 = vpack.c.b16 %v1748, %v1743
        %v2069 = vpack.c.b16 %v1749, %v1744
        %v2070 = vpack.c.b16 %v1750, %v1745
        %v2071 = vpack.c.b16 %v1751, %v1746
        %v2072 = vpack.c.b16 %v1752, %v1747
        %2393 = vmatprep.subr.bf16.mxu0 %v1754
        %2394 = vmatpush1.bf16.msra.mxu0 %v1753
        %2395 = vmatprep.subr.bf16.mxu0 %v1759
        %2396 = vmatpush1.bf16.msra.mxu0 %v1758
        %2397 = vmatprep.subr.bf16.mxu0 %v1764
        %2398 = vmatpush1.bf16.msra.mxu0 %v1763
        %2399 = vmatprep.subr.bf16.mxu0 %v1769
        %2400 = vmatpush1.bf16.msra.mxu0 %v1768
        %2401 = vmatprep.subr.bf16.mxu0 %v1774
        %2402 = vmatpush1.bf16.msra.mxu0 %v1773
        %2403 = vmatprep.subr.bf16.mxu0 %v1779
        %2404 = vmatpush1.bf16.msra.mxu0 %v1778
        %2405 = vmatprep.subr.bf16.mxu0 %v1784
        %2406 = vmatpush1.bf16.msra.mxu0 %v1783
        %2407 = vmatprep.subr.bf16.mxu0 %v1789
        %2408 = vmatpush1.bf16.msra.mxu0 %v1788
        %2409 = vmatprep.subr.bf16.mxu0 %v1794
        %2410 = vmatpush1.bf16.msra.mxu0 %v1793
        %2411 = vmatprep.subr.bf16.mxu0 %v1799
        %2412 = vmatpush1.bf16.msra.mxu0 %v1798
        %2413 = vmatprep.subr.bf16.mxu0 %v1804
        %2414 = vmatpush1.bf16.msra.mxu0 %v1803
        %2415 = vmatprep.subr.bf16.mxu0 %v1809
        %2416 = vmatpush1.bf16.msra.mxu0 %v1808
        %2417 = vmatprep.subr.bf16.mxu0 %v1814
        %2418 = vmatpush1.bf16.msra.mxu0 %v1813
        %2419 = vmatprep.subr.bf16.mxu0 %v1819
        %2420 = vmatpush1.bf16.msra.mxu0 %v1818
        %2421 = vmatprep.subr.bf16.mxu0 %v1824
        %2422 = vmatpush1.bf16.msra.mxu0 %v1823
        %2423 = vmatprep.subr.bf16.mxu0 %v1829
        %2424 = vmatpush1.bf16.msra.mxu0 %v1828
        %2425 = vmatprep.mubr.bf16.mxu0 %v714
        %2426 = vmatmul.mubr.bf16.gmra.mrb[0].mxu0 %v713
        %v2427 = vpop.f32.mrb[0].mxu0
        %v2428 = vadd.f32 0.0, %v2427
        %v2429 = vpop.f32.mrb[0].mxu0
        %v2430 = vadd.f32 0.0, %v2429
        %v2431 = vpop.f32.mrb[0].mxu0
        %v2432 = vadd.f32 0.0, %v2431
        %v2433 = vpop.f32.mrb[0].mxu0
        %v2434 = vadd.f32 0.0, %v2433
        %2435 = vdwg.mxu0
        %2436 = vmatprep.subr.bf16.mxu0 %v1834
        %2437 = vmatpush1.bf16.msra.mxu0 %v1833
        %2438 = vmatprep.subr.bf16.mxu0 %v1839
        %2439 = vmatpush1.bf16.msra.mxu0 %v1838
        %2440 = vmatprep.subr.bf16.mxu0 %v1844
        %2441 = vmatpush1.bf16.msra.mxu0 %v1843
        %2442 = vmatprep.subr.bf16.mxu0 %v1849
        %2443 = vmatpush1.bf16.msra.mxu0 %v1848
        %2444 = vmatprep.subr.bf16.mxu0 %v1854
        %2445 = vmatpush1.bf16.msra.mxu0 %v1853
        %2446 = vmatprep.subr.bf16.mxu0 %v1859
        %2447 = vmatpush1.bf16.msra.mxu0 %v1858
        %2448 = vmatprep.subr.bf16.mxu0 %v1864
        %2449 = vmatpush1.bf16.msra.mxu0 %v1863
        %2450 = vmatprep.subr.bf16.mxu0 %v1869
        %2451 = vmatpush1.bf16.msra.mxu0 %v1868
        %2452 = vmatprep.subr.bf16.mxu0 %v1874
        %2453 = vmatpush1.bf16.msra.mxu0 %v1873
        %2454 = vmatprep.subr.bf16.mxu0 %v1879
        %2455 = vmatpush1.bf16.msra.mxu0 %v1878
        %2456 = vmatprep.subr.bf16.mxu0 %v1884
        %2457 = vmatpush1.bf16.msra.mxu0 %v1883
        %2458 = vmatprep.subr.bf16.mxu0 %v1889
        %2459 = vmatpush1.bf16.msra.mxu0 %v1888
        %2460 = vmatprep.subr.bf16.mxu0 %v1894
        %2461 = vmatpush1.bf16.msra.mxu0 %v1893
        %2462 = vmatprep.subr.bf16.mxu0 %v1899
        %2463 = vmatpush1.bf16.msra.mxu0 %v1898
        %2464 = vmatprep.subr.bf16.mxu0 %v1904
        %2465 = vmatpush1.bf16.msra.mxu0 %v1903
        %2466 = vmatprep.subr.bf16.mxu0 %v1909
        %2467 = vmatpush1.bf16.msra.mxu0 %v1908
        %2468 = vmatprep.mubr.bf16.mxu0 %v716
        %2469 = vmatmul.mubr.bf16.gmra.mrb[0].mxu0 %v715
        %v2470 = vpop.f32.mrb[0].mxu0
        %v2471 = vadd.f32 %v2428, %v2470
        %v2472 = vpop.f32.mrb[0].mxu0
        %v2473 = vadd.f32 %v2430, %v2472
        %v2474 = vpop.f32.mrb[0].mxu0
        %v2475 = vadd.f32 %v2432, %v2474
        %v2476 = vpop.f32.mrb[0].mxu0
        %v2477 = vadd.f32 %v2434, %v2476
        %2478 = vdwg.mxu0
        %2479 = vmatprep.subr.bf16.mxu0 %v1914
        %2480 = vmatpush1.bf16.msra.mxu0 %v1913
        %2481 = vmatprep.subr.bf16.mxu0 %v1919
        %2482 = vmatpush1.bf16.msra.mxu0 %v1918
        %2483 = vmatprep.subr.bf16.mxu0 %v1924
        %2484 = vmatpush1.bf16.msra.mxu0 %v1923
        %2485 = vmatprep.subr.bf16.mxu0 %v1929
        %2486 = vmatpush1.bf16.msra.mxu0 %v1928
        %2487 = vmatprep.subr.bf16.mxu0 %v1934
        %2488 = vmatpush1.bf16.msra.mxu0 %v1933
        %2489 = vmatprep.subr.bf16.mxu0 %v1939
        %2490 = vmatpush1.bf16.msra.mxu0 %v1938
        %2491 = vmatprep.subr.bf16.mxu0 %v1944
        %2492 = vmatpush1.bf16.msra.mxu0 %v1943
        %2493 = vmatprep.subr.bf16.mxu0 %v1949
        %2494 = vmatpush1.bf16.msra.mxu0 %v1948
        %2495 = vmatprep.subr.bf16.mxu0 %v1954
        %2496 = vmatpush1.bf16.msra.mxu0 %v1953
        %2497 = vmatprep.subr.bf16.mxu0 %v1959
        %2498 = vmatpush1.bf16.msra.mxu0 %v1958
        %2499 = vmatprep.subr.bf16.mxu0 %v1964
        %2500 = vmatpush1.bf16.msra.mxu0 %v1963
        %2501 = vmatprep.subr.bf16.mxu0 %v1969
        %2502 = vmatpush1.bf16.msra.mxu0 %v1968
        %2503 = vmatprep.subr.bf16.mxu0 %v1974
        %2504 = vmatpush1.bf16.msra.mxu0 %v1973
        %2505 = vmatprep.subr.bf16.mxu0 %v1979
        %2506 = vmatpush1.bf16.msra.mxu0 %v1978
        %2507 = vmatprep.subr.bf16.mxu0 %v1984
        %2508 = vmatpush1.bf16.msra.mxu0 %v1983
        %2509 = vmatprep.subr.bf16.mxu0 %v1989
        %2510 = vmatpush1.bf16.msra.mxu0 %v1988
        %2511 = vmatprep.mubr.bf16.mxu0 %v718
        %2512 = vmatmul.mubr.bf16.gmra.mrb[0].mxu0 %v717
        %v2513 = vpop.f32.mrb[0].mxu0
        %v2514 = vadd.f32 %v2471, %v2513
        %v2515 = vpop.f32.mrb[0].mxu0
        %v2516 = vadd.f32 %v2473, %v2515
        %v2517 = vpop.f32.mrb[0].mxu0
        %v2518 = vadd.f32 %v2475, %v2517
        %v2519 = vpop.f32.mrb[0].mxu0
        %v2520 = vadd.f32 %v2477, %v2519
        %2521 = vdwg.mxu0
        %2522 = vmatprep.subr.bf16.mxu0 %v1994
        %2523 = vmatpush1.bf16.msra.mxu0 %v1993
        %2524 = vmatprep.subr.bf16.mxu0 %v1999
        %2525 = vmatpush1.bf16.msra.mxu0 %v1998
        %2526 = vmatprep.subr.bf16.mxu0 %v2004
        %2527 = vmatpush1.bf16.msra.mxu0 %v2003
        %2528 = vmatprep.subr.bf16.mxu0 %v2009
        %2529 = vmatpush1.bf16.msra.mxu0 %v2008
        %2530 = vmatprep.subr.bf16.mxu0 %v2014
        %2531 = vmatpush1.bf16.msra.mxu0 %v2013
        %2532 = vmatprep.subr.bf16.mxu0 %v2019
        %2533 = vmatpush1.bf16.msra.mxu0 %v2018
        %2534 = vmatprep.subr.bf16.mxu0 %v2024
        %2535 = vmatpush1.bf16.msra.mxu0 %v2023
        %2536 = vmatprep.subr.bf16.mxu0 %v2029
        %2537 = vmatpush1.bf16.msra.mxu0 %v2028
        %2538 = vmatprep.subr.bf16.mxu0 %v2034
        %2539 = vmatpush1.bf16.msra.mxu0 %v2033
        %2540 = vmatprep.subr.bf16.mxu0 %v2039
        %2541 = vmatpush1.bf16.msra.mxu0 %v2038
        %2542 = vmatprep.subr.bf16.mxu0 %v2044
        %2543 = vmatpush1.bf16.msra.mxu0 %v2043
        %2544 = vmatprep.subr.bf16.mxu0 %v2049
        %2545 = vmatpush1.bf16.msra.mxu0 %v2048
        %2546 = vmatprep.subr.bf16.mxu0 %v2054
        %2547 = vmatpush1.bf16.msra.mxu0 %v2053
        %2548 = vmatprep.subr.bf16.mxu0 %v2059
        %2549 = vmatpush1.bf16.msra.mxu0 %v2058
        %2550 = vmatprep.subr.bf16.mxu0 %v2064
        %2551 = vmatpush1.bf16.msra.mxu0 %v2063
        %2552 = vmatprep.subr.bf16.mxu0 %v2069
        %2553 = vmatpush1.bf16.msra.mxu0 %v2068
        %2554 = vmatprep.mubr.bf16.mxu0 %v720
        %2555 = vmatmul.mubr.bf16.gmra.mrb[0].mxu0 %v719
        %v2556 = vpop.f32.mrb[0].mxu0
        %v2557 = vadd.f32 %v2514, %v2556
        %v2558 = vpop.f32.mrb[0].mxu0
        %v2559 = vadd.f32 %v2516, %v2558
        %v2560 = vpop.f32.mrb[0].mxu0
        %v2561 = vadd.f32 %v2518, %v2560
        %v2562 = vpop.f32.mrb[0].mxu0
        %v2563 = vadd.f32 %v2520, %v2562
        %2564 = vdwg.mxu0
        %2565 = vmatprep.subr.bf16.mxu0 %v1756
        %2566 = vmatpush1.bf16.msra.mxu0 %v1755
        %2567 = vmatprep.subr.bf16.mxu0 %v1761
        %2568 = vmatpush1.bf16.msra.mxu0 %v1760
        %2569 = vmatprep.subr.bf16.mxu0 %v1766
        %2570 = vmatpush1.bf16.msra.mxu0 %v1765
        %2571 = vmatprep.subr.bf16.mxu0 %v1771
        %2572 = vmatpush1.bf16.msra.mxu0 %v1770
        %2573 = vmatprep.subr.bf16.mxu0 %v1776
        %2574 = vmatpush1.bf16.msra.mxu0 %v1775
        %2575 = vmatprep.subr.bf16.mxu0 %v1781
        %2576 = vmatpush1.bf16.msra.mxu0 %v1780
        %2577 = vmatprep.subr.bf16.mxu0 %v1786
        %2578 = vmatpush1.bf16.msra.mxu0 %v1785
        %2579 = vmatprep.subr.bf16.mxu0 %v1791
        %2580 = vmatpush1.bf16.msra.mxu0 %v1790
        %2581 = vmatprep.subr.bf16.mxu0 %v1796
        %2582 = vmatpush1.bf16.msra.mxu0 %v1795
        %2583 = vmatprep.subr.bf16.mxu0 %v1801
        %2584 = vmatpush1.bf16.msra.mxu0 %v1800
        %2585 = vmatprep.subr.bf16.mxu0 %v1806
        %2586 = vmatpush1.bf16.msra.mxu0 %v1805
        %2587 = vmatprep.subr.bf16.mxu0 %v1811
        %2588 = vmatpush1.bf16.msra.mxu0 %v1810
        %2589 = vmatprep.subr.bf16.mxu0 %v1816
        %2590 = vmatpush1.bf16.msra.mxu0 %v1815
        %2591 = vmatprep.subr.bf16.mxu0 %v1821
        %2592 = vmatpush1.bf16.msra.mxu0 %v1820
        %2593 = vmatprep.subr.bf16.mxu0 %v1826
        %2594 = vmatpush1.bf16.msra.mxu0 %v1825
        %2595 = vmatprep.subr.bf16.mxu0 %v1831
        %2596 = vmatpush1.bf16.msra.mxu0 %v1830
        %2597 = vmatprep.mubr.bf16.mxu0 %v714
        %2598 = vmatmul.mubr.bf16.gmra.mrb[0].mxu0 %v713
        %v2599 = vpop.f32.mrb[0].mxu0
        %v2600 = vadd.f32 0.0, %v2599
        %v2601 = vpop.f32.mrb[0].mxu0
        %v2602 = vadd.f32 0.0, %v2601
        %v2603 = vpop.f32.mrb[0].mxu0
        %v2604 = vadd.f32 0.0, %v2603
        %v2605 = vpop.f32.mrb[0].mxu0
        %v2606 = vadd.f32 0.0, %v2605
        %2607 = vdwg.mxu0
        %2608 = vmatprep.subr.bf16.mxu0 %v1836
        %2609 = vmatpush1.bf16.msra.mxu0 %v1835
        %2610 = vmatprep.subr.bf16.mxu0 %v1841
        %2611 = vmatpush1.bf16.msra.mxu0 %v1840
        %2612 = vmatprep.subr.bf16.mxu0 %v1846
        %2613 = vmatpush1.bf16.msra.mxu0 %v1845
        %2614 = vmatprep.subr.bf16.mxu0 %v1851
        %2615 = vmatpush1.bf16.msra.mxu0 %v1850
        %2616 = vmatprep.subr.bf16.mxu0 %v1856
        %2617 = vmatpush1.bf16.msra.mxu0 %v1855
        %2618 = vmatprep.subr.bf16.mxu0 %v1861
        %2619 = vmatpush1.bf16.msra.mxu0 %v1860
        %2620 = vmatprep.subr.bf16.mxu0 %v1866
        %2621 = vmatpush1.bf16.msra.mxu0 %v1865
        %2622 = vmatprep.subr.bf16.mxu0 %v1871
        %2623 = vmatpush1.bf16.msra.mxu0 %v1870
        %2624 = vmatprep.subr.bf16.mxu0 %v1876
        %2625 = vmatpush1.bf16.msra.mxu0 %v1875
        %2626 = vmatprep.subr.bf16.mxu0 %v1881
        %2627 = vmatpush1.bf16.msra.mxu0 %v1880
        %2628 = vmatprep.subr.bf16.mxu0 %v1886
        %2629 = vmatpush1.bf16.msra.mxu0 %v1885
        %2630 = vmatprep.subr.bf16.mxu0 %v1891
        %2631 = vmatpush1.bf16.msra.mxu0 %v1890
        %2632 = vmatprep.subr.bf16.mxu0 %v1896
        %2633 = vmatpush1.bf16.msra.mxu0 %v1895
        %2634 = vmatprep.subr.bf16.mxu0 %v1901
        %2635 = vmatpush1.bf16.msra.mxu0 %v1900
        %2636 = vmatprep.subr.bf16.mxu0 %v1906
        %2637 = vmatpush1.bf16.msra.mxu0 %v1905
        %2638 = vmatprep.subr.bf16.mxu0 %v1911
        %2639 = vmatpush1.bf16.msra.mxu0 %v1910
        %2640 = vmatprep.mubr.bf16.mxu0 %v716
        %2641 = vmatmul.mubr.bf16.gmra.mrb[0].mxu0 %v715
        %v2642 = vpop.f32.mrb[0].mxu0
        %v2643 = vadd.f32 %v2600, %v2642
        %v2644 = vpop.f32.mrb[0].mxu0
        %v2645 = vadd.f32 %v2602, %v2644
        %v2646 = vpop.f32.mrb[0].mxu0
        %v2647 = vadd.f32 %v2604, %v2646
        %v2648 = vpop.f32.mrb[0].mxu0
        %v2649 = vadd.f32 %v2606, %v2648
        %2650 = vdwg.mxu0
        %2651 = vmatprep.subr.bf16.mxu0 %v1916
        %2652 = vmatpush1.bf16.msra.mxu0 %v1915
        %2653 = vmatprep.subr.bf16.mxu0 %v1921
        %2654 = vmatpush1.bf16.msra.mxu0 %v1920
        %2655 = vmatprep.subr.bf16.mxu0 %v1926
        %2656 = vmatpush1.bf16.msra.mxu0 %v1925
        %2657 = vmatprep.subr.bf16.mxu0 %v1931
        %2658 = vmatpush1.bf16.msra.mxu0 %v1930
        %2659 = vmatprep.subr.bf16.mxu0 %v1936
        %2660 = vmatpush1.bf16.msra.mxu0 %v1935
        %2661 = vmatprep.subr.bf16.mxu0 %v1941
        %2662 = vmatpush1.bf16.msra.mxu0 %v1940
        %2663 = vmatprep.subr.bf16.mxu0 %v1946
        %2664 = vmatpush1.bf16.msra.mxu0 %v1945
        %2665 = vmatprep.subr.bf16.mxu0 %v1951
        %2666 = vmatpush1.bf16.msra.mxu0 %v1950
        %2667 = vmatprep.subr.bf16.mxu0 %v1956
        %2668 = vmatpush1.bf16.msra.mxu0 %v1955
        %2669 = vmatprep.subr.bf16.mxu0 %v1961
        %2670 = vmatpush1.bf16.msra.mxu0 %v1960
        %2671 = vmatprep.subr.bf16.mxu0 %v1966
        %2672 = vmatpush1.bf16.msra.mxu0 %v1965
        %2673 = vmatprep.subr.bf16.mxu0 %v1971
        %2674 = vmatpush1.bf16.msra.mxu0 %v1970
        %2675 = vmatprep.subr.bf16.mxu0 %v1976
        %2676 = vmatpush1.bf16.msra.mxu0 %v1975
        %2677 = vmatprep.subr.bf16.mxu0 %v1981
        %2678 = vmatpush1.bf16.msra.mxu0 %v1980
        %2679 = vmatprep.subr.bf16.mxu0 %v1986
        %2680 = vmatpush1.bf16.msra.mxu0 %v1985
        %2681 = vmatprep.subr.bf16.mxu0 %v1991
        %2682 = vmatpush1.bf16.msra.mxu0 %v1990
        %2683 = vmatprep.mubr.bf16.mxu0 %v718
        %2684 = vmatmul.mubr.bf16.gmra.mrb[0].mxu0 %v717
        %v2685 = vpop.f32.mrb[0].mxu0
        %v2686 = vadd.f32 %v2643, %v2685
        %v2687 = vpop.f32.mrb[0].mxu0
        %v2688 = vadd.f32 %v2645, %v2687
        %v2689 = vpop.f32.mrb[0].mxu0
        %v2690 = vadd.f32 %v2647, %v2689
        %v2691 = vpop.f32.mrb[0].mxu0
        %v2692 = vadd.f32 %v2649, %v2691
        %2693 = vdwg.mxu0
        %2694 = vmatprep.subr.bf16.mxu0 %v1996
        %2695 = vmatpush1.bf16.msra.mxu0 %v1995
        %2696 = vmatprep.subr.bf16.mxu0 %v2001
        %2697 = vmatpush1.bf16.msra.mxu0 %v2000
        %2698 = vmatprep.subr.bf16.mxu0 %v2006
        %2699 = vmatpush1.bf16.msra.mxu0 %v2005
        %2700 = vmatprep.subr.bf16.mxu0 %v2011
        %2701 = vmatpush1.bf16.msra.mxu0 %v2010
        %2702 = vmatprep.subr.bf16.mxu0 %v2016
        %2703 = vmatpush1.bf16.msra.mxu0 %v2015
        %2704 = vmatprep.subr.bf16.mxu0 %v2021
        %2705 = vmatpush1.bf16.msra.mxu0 %v2020
        %2706 = vmatprep.subr.bf16.mxu0 %v2026
        %2707 = vmatpush1.bf16.msra.mxu0 %v2025
        %2708 = vmatprep.subr.bf16.mxu0 %v2031
        %2709 = vmatpush1.bf16.msra.mxu0 %v2030
        %2710 = vmatprep.subr.bf16.mxu0 %v2036
        %2711 = vmatpush1.bf16.msra.mxu0 %v2035
        %2712 = vmatprep.subr.bf16.mxu0 %v2041
        %2713 = vmatpush1.bf16.msra.mxu0 %v2040
        %2714 = vmatprep.subr.bf16.mxu0 %v2046
        %2715 = vmatpush1.bf16.msra.mxu0 %v2045
        %2716 = vmatprep.subr.bf16.mxu0 %v2051
        %2717 = vmatpush1.bf16.msra.mxu0 %v2050
        %2718 = vmatprep.subr.bf16.mxu0 %v2056
        %2719 = vmatpush1.bf16.msra.mxu0 %v2055
        %2720 = vmatprep.subr.bf16.mxu0 %v2061
        %2721 = vmatpush1.bf16.msra.mxu0 %v2060
        %2722 = vmatprep.subr.bf16.mxu0 %v2066
        %2723 = vmatpush1.bf16.msra.mxu0 %v2065
        %2724 = vmatprep.subr.bf16.mxu0 %v2071
        %2725 = vmatpush1.bf16.msra.mxu0 %v2070
        %2726 = vmatprep.mubr.bf16.mxu0 %v720
        %2727 = vmatmul.mubr.bf16.gmra.mrb[0].mxu0 %v719
        %v2728 = vpop.f32.mrb[0].mxu0
        %v2729 = vadd.f32 %v2686, %v2728
        %v2730 = vpop.f32.mrb[0].mxu0
        %v2731 = vadd.f32 %v2688, %v2730
        %v2732 = vpop.f32.mrb[0].mxu0
        %v2733 = vadd.f32 %v2690, %v2732
        %v2734 = vpop.f32.mrb[0].mxu0
        %v2735 = vadd.f32 %v2692, %v2734
        %2736 = vdwg.mxu0
        %2737 = vmatprep.subr.bf16.mxu0 0
        %2738 = vmatpush1.bf16.msra.mxu0 %v1757
        %2739 = vmatprep.subr.bf16.mxu0 0
        %2740 = vmatpush1.bf16.msra.mxu0 %v1762
        %2741 = vmatprep.subr.bf16.mxu0 0
        %2742 = vmatpush1.bf16.msra.mxu0 %v1767
        %2743 = vmatprep.subr.bf16.mxu0 0
        %2744 = vmatpush1.bf16.msra.mxu0 %v1772
        %2745 = vmatprep.subr.bf16.mxu0 0
        %2746 = vmatpush1.bf16.msra.mxu0 %v1777
        %2747 = vmatprep.subr.bf16.mxu0 0
        %2748 = vmatpush1.bf16.msra.mxu0 %v1782
        %2749 = vmatprep.subr.bf16.mxu0 0
        %2750 = vmatpush1.bf16.msra.mxu0 %v1787
        %2751 = vmatprep.subr.bf16.mxu0 0
        %2752 = vmatpush1.bf16.msra.mxu0 %v1792
        %2753 = vmatprep.subr.bf16.mxu0 0
        %2754 = vmatpush1.bf16.msra.mxu0 %v1797
        %2755 = vmatprep.subr.bf16.mxu0 0
        %2756 = vmatpush1.bf16.msra.mxu0 %v1802
        %2757 = vmatprep.subr.bf16.mxu0 0
        %2758 = vmatpush1.bf16.msra.mxu0 %v1807
        %2759 = vmatprep.subr.bf16.mxu0 0
        %2760 = vmatpush1.bf16.msra.mxu0 %v1812
        %2761 = vmatprep.subr.bf16.mxu0 0
        %2762 = vmatpush1.bf16.msra.mxu0 %v1817
        %2763 = vmatprep.subr.bf16.mxu0 0
        %2764 = vmatpush1.bf16.msra.mxu0 %v1822
        %2765 = vmatprep.subr.bf16.mxu0 0
        %2766 = vmatpush1.bf16.msra.mxu0 %v1827
        %2767 = vmatprep.subr.bf16.mxu0 0
        %2768 = vmatpush1.bf16.msra.mxu0 %v1832
        %2769 = vmatprep.mubr.bf16.mxu0 %v714
        %2770 = vmatmul.mubr.bf16.gmra.mrb[0].mxu0 %v713
        %v2771 = vpop.f32.mrb[0].mxu0
        %v2772 = vadd.f32 0.0, %v2771
        %v2773 = vpop.f32.mrb[0].mxu0
        %v2774 = vpop.f32.mrb[0].mxu0
        %v2775 = vadd.f32 0.0, %v2774
        %v2776 = vpop.f32.mrb[0].mxu0
        %2777 = vdwg.mxu0
        %2778 = vmatprep.subr.bf16.mxu0 0
        %2779 = vmatpush1.bf16.msra.mxu0 %v1837
        %2780 = vmatprep.subr.bf16.mxu0 0
        %2781 = vmatpush1.bf16.msra.mxu0 %v1842
        %2782 = vmatprep.subr.bf16.mxu0 0
        %2783 = vmatpush1.bf16.msra.mxu0 %v1847
        %2784 = vmatprep.subr.bf16.mxu0 0
        %2785 = vmatpush1.bf16.msra.mxu0 %v1852
        %2786 = vmatprep.subr.bf16.mxu0 0
        %2787 = vmatpush1.bf16.msra.mxu0 %v1857
        %2788 = vmatprep.subr.bf16.mxu0 0
        %2789 = vmatpush1.bf16.msra.mxu0 %v1862
        %2790 = vmatprep.subr.bf16.mxu0 0
        %2791 = vmatpush1.bf16.msra.mxu0 %v1867
        %2792 = vmatprep.subr.bf16.mxu0 0
        %2793 = vmatpush1.bf16.msra.mxu0 %v1872
        %2794 = vmatprep.subr.bf16.mxu0 0
        %2795 = vmatpush1.bf16.msra.mxu0 %v1877
        %2796 = vmatprep.subr.bf16.mxu0 0
        %2797 = vmatpush1.bf16.msra.mxu0 %v1882
        %2798 = vmatprep.subr.bf16.mxu0 0
        %2799 = vmatpush1.bf16.msra.mxu0 %v1887
        %2800 = vmatprep.subr.bf16.mxu0 0
        %2801 = vmatpush1.bf16.msra.mxu0 %v1892
        %2802 = vmatprep.subr.bf16.mxu0 0
        %2803 = vmatpush1.bf16.msra.mxu0 %v1897
        %2804 = vmatprep.subr.bf16.mxu0 0
        %2805 = vmatpush1.bf16.msra.mxu0 %v1902
        %2806 = vmatprep.subr.bf16.mxu0 0
        %2807 = vmatpush1.bf16.msra.mxu0 %v1907
        %2808 = vmatprep.subr.bf16.mxu0 0
        %2809 = vmatpush1.bf16.msra.mxu0 %v1912
        %2810 = vmatprep.mubr.bf16.mxu0 %v716
        %2811 = vmatmul.mubr.bf16.gmra.mrb[0].mxu0 %v715
        %v2812 = vpop.f32.mrb[0].mxu0
        %v2813 = vadd.f32 %v2772, %v2812
        %v2814 = vpop.f32.mrb[0].mxu0
        %v2815 = vpop.f32.mrb[0].mxu0
        %v2816 = vadd.f32 %v2775, %v2815
        %v2817 = vpop.f32.mrb[0].mxu0
        %2818 = vdwg.mxu0
        %2819 = vmatprep.subr.bf16.mxu0 0
        %2820 = vmatpush1.bf16.msra.mxu0 %v1917
        %2821 = vmatprep.subr.bf16.mxu0 0
        %2822 = vmatpush1.bf16.msra.mxu0 %v1922
        %2823 = vmatprep.subr.bf16.mxu0 0
        %2824 = vmatpush1.bf16.msra.mxu0 %v1927
        %2825 = vmatprep.subr.bf16.mxu0 0
        %2826 = vmatpush1.bf16.msra.mxu0 %v1932
        %2827 = vmatprep.subr.bf16.mxu0 0
        %2828 = vmatpush1.bf16.msra.mxu0 %v1937
        %2829 = vmatprep.subr.bf16.mxu0 0
        %2830 = vmatpush1.bf16.msra.mxu0 %v1942
        %2831 = vmatprep.subr.bf16.mxu0 0
        %2832 = vmatpush1.bf16.msra.mxu0 %v1947
        %2833 = vmatprep.subr.bf16.mxu0 0
        %2834 = vmatpush1.bf16.msra.mxu0 %v1952
        %2835 = vmatprep.subr.bf16.mxu0 0
        %2836 = vmatpush1.bf16.msra.mxu0 %v1957
        %2837 = vmatprep.subr.bf16.mxu0 0
        %2838 = vmatpush1.bf16.msra.mxu0 %v1962
        %2839 = vmatprep.subr.bf16.mxu0 0
        %2840 = vmatpush1.bf16.msra.mxu0 %v1967
        %2841 = vmatprep.subr.bf16.mxu0 0
        %2842 = vmatpush1.bf16.msra.mxu0 %v1972
        %2843 = vmatprep.subr.bf16.mxu0 0
        %2844 = vmatpush1.bf16.msra.mxu0 %v1977
        %2845 = vmatprep.subr.bf16.mxu0 0
        %2846 = vmatpush1.bf16.msra.mxu0 %v1982
        %2847 = vmatprep.subr.bf16.mxu0 0
        %2848 = vmatpush1.bf16.msra.mxu0 %v1987
        %2849 = vmatprep.subr.bf16.mxu0 0
        %2850 = vmatpush1.bf16.msra.mxu0 %v1992
        %2851 = vmatprep.mubr.bf16.mxu0 %v718
        %2852 = vmatmul.mubr.bf16.gmra.mrb[0].mxu0 %v717
        %v2853 = vpop.f32.mrb[0].mxu0
        %v2854 = vadd.f32 %v2813, %v2853
        %v2855 = vpop.f32.mrb[0].mxu0
        %v2856 = vpop.f32.mrb[0].mxu0
        %v2857 = vadd.f32 %v2816, %v2856
        %v2858 = vpop.f32.mrb[0].mxu0
        %2859 = vdwg.mxu0
        %2860 = vmatprep.subr.bf16.mxu0 0
        %2861 = vmatpush1.bf16.msra.mxu0 %v1997
        %2862 = vmatprep.subr.bf16.mxu0 0
        %2863 = vmatpush1.bf16.msra.mxu0 %v2002
        %2864 = vmatprep.subr.bf16.mxu0 0
        %2865 = vmatpush1.bf16.msra.mxu0 %v2007
        %2866 = vmatprep.subr.bf16.mxu0 0
        %2867 = vmatpush1.bf16.msra.mxu0 %v2012
        %2868 = vmatprep.subr.bf16.mxu0 0
        %2869 = vmatpush1.bf16.msra.mxu0 %v2017
        %2870 = vmatprep.subr.bf16.mxu0 0
        %2871 = vmatpush1.bf16.msra.mxu0 %v2022
        %2872 = vmatprep.subr.bf16.mxu0 0
        %2873 = vmatpush1.bf16.msra.mxu0 %v2027
        %2874 = vmatprep.subr.bf16.mxu0 0
        %2875 = vmatpush1.bf16.msra.mxu0 %v2032
        %2876 = vmatprep.subr.bf16.mxu0 0
        %2877 = vmatpush1.bf16.msra.mxu0 %v2037
        %2878 = vmatprep.subr.bf16.mxu0 0
        %2879 = vmatpush1.bf16.msra.mxu0 %v2042
        %2880 = vmatprep.subr.bf16.mxu0 0
        %2881 = vmatpush1.bf16.msra.mxu0 %v2047
        %2882 = vmatprep.subr.bf16.mxu0 0
        %2883 = vmatpush1.bf16.msra.mxu0 %v2052
        %2884 = vmatprep.subr.bf16.mxu0 0
        %2885 = vmatpush1.bf16.msra.mxu0 %v2057
        %2886 = vmatprep.subr.bf16.mxu0 0
        %2887 = vmatpush1.bf16.msra.mxu0 %v2062
        %2888 = vmatprep.subr.bf16.mxu0 0
        %2889 = vmatpush1.bf16.msra.mxu0 %v2067
        %2890 = vmatprep.subr.bf16.mxu0 0
        %2891 = vmatpush1.bf16.msra.mxu0 %v2072
        %2892 = vmatprep.mubr.bf16.mxu0 %v720
        %2893 = vmatmul.mubr.bf16.gmra.mrb[0].mxu0 %v719
        %v2894 = vpop.f32.mrb[0].mxu0
        %v2895 = vadd.f32 %v2854, %v2894
        %v2896 = vpop.f32.mrb[0].mxu0
        %v2897 = vpop.f32.mrb[0].mxu0
        %v2898 = vadd.f32 %v2857, %v2897
        %v2899 = vpop.f32.mrb[0].mxu0
        %2900 = vdwg.mxu0
        %vm2903 = vcmask 1046528
        %v2904 = vrot.slane %v2559, 1
        %v2905 = vrot.slane %v2563, 1
        %v2906 = vsel %vm2903, %v2904, %v2905
        %v2909 = vadd.f32 %v2557, %v2906
        %v2910 = vadd.f32 %v2561, %v2905
        %vm2913 = vcmask 1045504
        %v2914 = vrot.slane %v2729, 2
        %v2915 = vrot.slane %v2733, 2
        %v2916 = vsel %vm2913, %v2914, %v2915
        %v2919 = vadd.f32 %v2909, %v2916
        %v2920 = vadd.f32 %v2910, %v2915
        %vm2923 = vcmask 1044480
        %v2924 = vrot.slane %v2731, 3
        %v2925 = vrot.slane %v2735, 3
        %v2926 = vsel %vm2923, %v2924, %v2925
        %v2929 = vadd.f32 %v2919, %v2926
        %v2930 = vadd.f32 %v2920, %v2925
        %vm2933 = vcmask 1043456
        %v2934 = vrot.slane %v2895, 4
        %v2935 = vrot.slane %v2898, 4
        %v2936 = vsel %vm2933, %v2934, %v2935
        %v2939 = vadd.f32 %v2929, %v2936
        %v2940 = vadd.f32 %v2930, %v2935
        %v2941 = vld [vmem:[#allocation7] sm:$0x1]
        %v2943 = vlaneseq
        %v2944 = vshrl.u32 %v2943, 7
        %v2945 = vsub.s32 0, %v2944
        %v2946 = vrot.slane %v2941, %v2945
        %v2948 = vadd.f32 %v2939, %v2946
        %v2949 = vadd.f32 %v2940, %v2946
        %v2950 = vmax.f32 %v2948, 0.0
        %v2951 = vmax.f32 %v2949, 0.0
        %v2952 = vlaneseq
        %v2953 = vshrl.u32 %v2952, 7
        %v2954 = vadd.s32 %v2953, 8
        %v2955 = vlaneseq
        %v2956 = vand.u32 %v2955, 127
        %vm2957 = vcmp.lt.s32.totalorder %v2956, 32
        %vm2958 = vcmp.lt.s32.totalorder %v2956, 64
        %vm2959 = vcmp.lt.s32.totalorder %v2956, 96
        %v2960 = vsel %vm2959, 12, 0
        %v2961 = vsel %vm2958, 11, %v2960
        %v2962 = vsel %vm2957, 10, %v2961
        %vm2963 = vcmp.lt.s32.totalorder %v2953, %v2962
        %vm2964 = vcmp.lt.s32.totalorder %v2954, %v2962
        %v2965 = vsel %vm2963, %v2950, 0.0
        %v2966 = vsel %vm2964, %v2951, 0.0
        %v2967 = vsel %vm2933, %v2966, -inf
        %v2968 = vmax.f32 %v2965, %v2967
        %v2969 = vrot.slane %v2968, 4
        %v2970 = vmax.f32 %v2968, %v2969
        %v2971 = vrot.slane %v2970, 2
        %v2972 = vmax.f32 %v2970, %v2971
        %v2973 = vrot.slane %v2972, 1
        %v2974 = vmax.f32 %v2972, %v2973
        %v2975 = vld [vmem:[#allocation8] sm:$0xff]
        %v2976 = vld [vmem:[#allocation8 + $0x8] sm:$0xff]
        %v2977 = vld [vmem:[#allocation8 + $0x10] sm:$0xff]
        %v2978 = vld [vmem:[#allocation8 + $0x18] sm:$0xff]
        %v2979 = vld [vmem:[#allocation8 + $0x20] sm:$0xff]
        %v2980 = vld [vmem:[#allocation8 + $0x28] sm:$0xff]
        %v2981 = vld [vmem:[#allocation8 + $0x30] sm:$0xff]
        %v2982 = vld [vmem:[#allocation8 + $0x38] sm:$0xff]
        %v2983 = vld [vmem:[#allocation8 + $0x40] sm:$0xff]
        %v2984 = vld [vmem:[#allocation8 + $0x48] sm:$0xff]
        %v2985 = vld [vmem:[#allocation8 + $0x50] sm:$0xff]
        %v2986 = vld [vmem:[#allocation8 + $0x58] sm:$0xff]
        %v2987 = vld [vmem:[#allocation8 + $0x60] sm:$0xff]
        %v2988 = vld [vmem:[#allocation8 + $0x68] sm:$0xff]
        %v2989 = vld [vmem:[#allocation8 + $0x70] sm:$0xff]
        %v2990 = vld [vmem:[#allocation8 + $0x78] sm:$0xff]
        %v2991 = vld [vmem:[#allocation10] sm:$0x1]
        %2992 = vmatprep.subr.mxu0 0.0
        %2993 = vmatpush1.msra.mxu0 %v2975
        %2994 = vmatprep.subr.mxu0 0.0
        %2995 = vmatpush1.msra.mxu0 %v2976
        %2996 = vmatprep.subr.mxu0 0.0
        %2997 = vmatpush1.msra.mxu0 %v2977
        %2998 = vmatprep.subr.mxu0 0.0
        %2999 = vmatpush1.msra.mxu0 %v2978
        %3000 = vmatprep.subr.mxu0 0.0
        %3001 = vmatpush1.msra.mxu0 %v2979
        %3002 = vmatprep.subr.mxu0 0.0
        %3003 = vmatpush1.msra.mxu0 %v2980
        %3004 = vmatprep.subr.mxu0 0.0
        %3005 = vmatpush1.msra.mxu0 %v2981
        %3006 = vmatprep.subr.mxu0 0.0
        %3007 = vmatpush1.msra.mxu0 %v2982
        %3008 = vmatprep.subr.mxu0 0.0
        %3009 = vmatpush1.msra.mxu0 %v2983
        %3010 = vmatprep.subr.mxu0 0.0
        %3011 = vmatpush1.msra.mxu0 %v2984
        %3012 = vmatprep.subr.mxu0 0.0
        %3013 = vmatpush1.msra.mxu0 %v2985
        %3014 = vmatprep.subr.mxu0 0.0
        %3015 = vmatpush1.msra.mxu0 %v2986
        %3016 = vmatprep.subr.mxu0 0.0
        %3017 = vmatpush1.msra.mxu0 %v2987
        %3018 = vmatprep.subr.mxu0 0.0
        %3019 = vmatpush1.msra.mxu0 %v2988
        %3020 = vmatprep.subr.mxu0 0.0
        %3021 = vmatpush1.msra.mxu0 %v2989
        %3022 = vmatprep.subr.mxu0 0.0
        %3023 = vmatpush1.msra.mxu0 %v2990
        %3024 = vmatprep.subr.mxu0 0.0
        %3025 = vmatpush1.msra.mxu0 0.0
        %3026 = vmatprep.subr.mxu0 0.0
        %3027 = vmatpush1.msra.mxu0 0.0
        %3028 = vmatprep.subr.mxu0 0.0
        %3029 = vmatpush1.msra.mxu0 0.0
        %3030 = vmatprep.subr.mxu0 0.0
        %3031 = vmatpush1.msra.mxu0 0.0
        %3032 = vmatprep.subr.mxu0 0.0
        %3033 = vmatpush1.msra.mxu0 0.0
        %3034 = vmatprep.subr.mxu0 0.0
        %3035 = vmatpush1.msra.mxu0 0.0
        %3036 = vmatprep.subr.mxu0 0.0
        %3037 = vmatpush1.msra.mxu0 0.0
        %3038 = vmatprep.subr.mxu0 0.0
        %3039 = vmatpush1.msra.mxu0 0.0
        %3040 = vmatprep.subr.mxu0 0.0
        %3041 = vmatpush1.msra.mxu0 0.0
        %3042 = vmatprep.subr.mxu0 0.0
        %3043 = vmatpush1.msra.mxu0 0.0
        %3044 = vmatprep.subr.mxu0 0.0
        %3045 = vmatpush1.msra.mxu0 0.0
        %3046 = vmatprep.subr.mxu0 0.0
        %3047 = vmatpush1.msra.mxu0 0.0
        %3048 = vmatprep.subr.mxu0 0.0
        %3049 = vmatpush1.msra.mxu0 0.0
        %3050 = vmatprep.subr.mxu0 0.0
        %3051 = vmatpush1.msra.mxu0 0.0
        %3052 = vmatprep.subr.mxu0 0.0
        %3053 = vmatpush1.msra.mxu0 0.0
        %3054 = vmatprep.subr.mxu0 0.0
        %3055 = vmatpush1.msra.mxu0 0.0
        %3056 = vmatprep.mubr.f32.mxu0 0.0
        %3057 = vmatmul.mubr.f32.gmra.mrb[0].mxu0 %v2974
        %v3058 = vpop.f32.mrb[0].mxu0
        %v3059 = vadd.f32 %v2991, %v3058
        %v3060 = vpop.f32.mrb[0].mxu0
        %3061 = vdwg.mxu0
        %v3062 = vsub.f32 0.0, %v3059
        %v3063 = vmul.f32 %v3062, 1.442695
        %v3064 = vpow.pop %v3063
        %v3065 = vadd.f32 %v3064, 1.0
        %v3066 = vrcp.pop %v3065
        %v3067 = vmul.f32 1.0, %v3066
        %3068 = vst [vmem:[%s295] sm:$0x1] %v3067
        %s3069 = sand.u32 %s142, 1
        %s3070 = scalar_lea.sflag [#allocation4], %s3069
        %s3071 = sand.u32 %s142, 1
        %s3072 = scalar_lea.vmem [#allocation11], %s3071
        // Predicated region
        $region61: #{tpu_custom_call.1} parent=39 // pred_check
          %p3073 = pneg %p152
        $region62: #{tpu_custom_call.1} parent=39 // pred_check_branch
          %3075 = sbr.rel (%p3073) target = $region64
        $region63: #{tpu_custom_call.1} parent=39 // pred_region
          %s3077 = ssub.s32 16, 16
          %3078 = vsyncadd %s3070, %s3077
          %s3079 = smul.addr %s24, 16
          %s3080 = scalar_lea.hbm %s5, %s3079
          %s3082 = sshll.u32 %s3072, 4
          %s3083 = int_to_ptr.vmem [resolvable:$true] %s3082
          %3085 = dma.vmem_to_hbm [thread:$0]  %s3083, 16, %s3080, %s3070
        $region64: #{tpu_custom_call.1} parent=39 // pred_fallthru
          _
      $region40: #{tpu_custom_call.1} parent=5 // pred_fallthru
        _
      %p3086 = scmp.le.s32.totalorder 2, %s19
      // Predicated region
      $region65: #{tpu_custom_call.1} parent=5 // pred_check
        %p3087 = pneg %p3086
      $region66: #{tpu_custom_call.1} parent=5 // pred_check_branch
        %3089 = sbr.rel (%p3087) target = $region68
      $region67: #{tpu_custom_call.1} parent=5 // pred_region
        %s3090 = ssub.s32 %s19, 2
        // Predicated region
        $region69: #{tpu_custom_call.1} parent=67 // pred_check
          %p3091 = pneg %p158
        $region70: #{tpu_custom_call.1} parent=67 // pred_check_branch
          %3093 = sbr.rel (%p3091) target = $region72
        $region71: #{tpu_custom_call.1} parent=67 // pred_region
          %s3094 = sand.u32 %s143, 1
          %s3095 = scalar_lea.sflag [#allocation4], %s3094
          %s3096 = sand.u32 %s143, 1
          %s3097 = scalar_lea.vmem [#allocation11], %s3096
          %3098 = dma.done %s3095, 16
        $region72: #{tpu_custom_call.1} parent=67 // pred_fallthru
          _
      $region68: #{tpu_custom_call.1} parent=5 // pred_fallthru
        _
    $region6: #{tpu_custom_call.1} parent=1 // loop_footer
      %s23 = sadd.s32 1, %s19
    $region7: #{tpu_custom_call.1} parent=1 // loop_footer_branch
      %18 = sbr.rel target = $region3
    $region8: #{tpu_custom_call.1} parent=1 // loop_exit
      _
    %3099 = vsyncpa [#allocation3], 1
    %s3100 = scalar_lea.sflag [#allocation3], 1
    %3101 = vsyncpa %s3100, 1
    %3102 = vsyncpa [#allocation6], 1
    %3103 = vsyncpa [#allocation9], 1
    %3104 = vsyncpa [#allocation4], 1
    %s3105 = scalar_lea.sflag [#allocation4], 1
    %3106 = vsyncpa %s3105, 1

</llo_original>
